<compile_context>
chip_gen: v7x
topology: tpu7x:2x2x1
jax: 0.10.0
libtpu: 0.0.40
codegen_flags: <defaults>
</compile_context>

<pallas_src>
import math
from functools import partial

import jax
import jax.numpy as jnp
from jax.experimental import pallas as pl
from jax.experimental.pallas import tpu as pltpu


def _self_attention_kernel(xq_ref, xk_ref, xv_ref, wq_ref, wk_ref, wv_ref,
                           b_ref, o_ref, *, head_num, head_dim):
    """Single invocation (no grid): whole (N, L, E) problem resident in VMEM.

    xq_ref/xk_ref/xv_ref : (N, L, E)    VMEM
    wq_ref/wk_ref/wv_ref : (E, H*D)     VMEM  (wq already scaled by 1/sqrt(D))
    b_ref                : (3, H*D)     VMEM  rows = [bq*scale, bk, bv]
    o_ref                : (N, L, H*D)  VMEM
    """
    N, L, E = xq_ref.shape
    H, D = head_num, head_dim
    HD = H * D
    x_dtype = xq_ref.dtype          # MXU operands stay in the input dtype
    f32 = jnp.float32

    b = b_ref[...].astype(f32)                                   # (3, HD)

    def proj(x_ref, w_ref, bias_row):
        # One MXU matmul for the whole batch: (N*L, E) @ (E, HD), f32 acc.
        x2 = x_ref[...].reshape(N * L, E)
        y = jnp.dot(x2, w_ref[...], preferred_element_type=f32) + bias_row
        return y.reshape(N, L, HD)                               # f32

    q = proj(xq_ref, wq_ref, b[0:1, :])   # scale pre-folded into wq / bq
    k = proj(xk_ref, wk_ref, b[1:2, :])
    v = proj(xv_ref, wv_ref, b[2:3, :])

    # Split heads into one fused (H*N) batch dim using static lane slices and
    # a major-axis concat (no lane-splitting reshape, no sublane transpose),
    # then run ONE batched einsum for all heads' scores and one for all PV.
    def heads(x):                                                # -> (H*N, L, D)
        x = x.astype(x_dtype)
        return jnp.concatenate(
            [x[:, :, h * D:(h + 1) * D] for h in range(H)], axis=0)

    qh, kh, vh = heads(q), heads(k), heads(v)

    scores = jnp.einsum('bqd,bkd->bqk', qh, kh,
                        preferred_element_type=f32)              # (H*N, L, L)

    # Softmax in f32 on the VPU; exact division (kernel is nowhere near
    # EUP-bound, so the approx reciprocal is not worth the accuracy loss).
    m = jnp.max(scores, axis=-1, keepdims=True)
    p = jnp.exp(scores - m)
    attn = p / jnp.sum(p, axis=-1, keepdims=True)
    # TODO(synk): training-mode attention dropout not implemented (eval-mode
    # identity); would need pltpu.prng_* inside the kernel.

    outh = jnp.einsum('bqk,bkd->bqd', attn.astype(x_dtype), vh,
                      preferred_element_type=f32)                # (H*N, L, D)

    # Re-interleave heads into lanes and store the output block ONCE.
    out = jnp.concatenate(
        [outh[h * N:(h + 1) * N] for h in range(H)], axis=-1)    # (N, L, HD)
    o_ref[...] = out.astype(o_ref.dtype)


def prepare_params(params, *, head_dim, dtype=None):
    """One-time parameter prep (call once, reuse across forward passes).

    Folds 1/sqrt(head_dim) into WQ / bq, stacks the biases into one (3, H*D)
    array, and optionally casts to a compute dtype (pass jnp.bfloat16 for
    production -- the MXU is bf16-native; fp8 on v7x if quantizing).
    """
    scale = 1.0 / math.sqrt(head_dim)
    prepared = {
        "wq": params["wq"] * scale,
        "wk": params["wk"],
        "wv": params["wv"],
        "b": jnp.stack([params["bq"] * scale, params["bk"], params["bv"]],
                       axis=0),                                  # (3, H*D)
    }
    if dtype is not None:
        prepared = {name: v.astype(dtype) for name, v in prepared.items()}
    return prepared


def self_attention(Q_seq, K_seq, V_seq, prepared, *, head_num, head_dim):
    """prepared: output of prepare_params.  Returns (N, L, head_num*head_dim)."""
    N, L, E = Q_seq.shape
    out_dim = head_num * head_dim
    dtype = Q_seq.dtype

    kernel = partial(_self_attention_kernel,
                     head_num=head_num, head_dim=head_dim)

    # Whole-array VMEM blocks, single invocation (no grid): at these shapes
    # everything fits trivially and per-grid-step overhead would dominate.
    vmem = pl.BlockSpec(memory_space=pltpu.MemorySpace.VMEM)

    return pl.pallas_call(
        kernel,
        out_shape=jax.ShapeDtypeStruct((N, L, out_dim), dtype),
        in_specs=[vmem] * 7,
        out_specs=vmem,
        compiler_params=pltpu.CompilerParams(
            # Explicit budget; safe on v5e/v6e (128 MiB) and v7x (64 MiB).
            vmem_limit_bytes=32 * 1024 * 1024,
        ),
    )(Q_seq, K_seq, V_seq,
      prepared["wq"], prepared["wk"], prepared["wv"], prepared["b"])


def _reference(Q_seq, K_seq, V_seq, params, *, head_num, head_dim):
    """Pure-JAX reference mirroring the PyTorch forward (eval mode)."""
    N, L, E = Q_seq.shape
    Q = Q_seq @ params["wq"] + params["bq"]
    K = K_seq @ params["wk"] + params["bk"]
    V = V_seq @ params["wv"] + params["bv"]
    Q = Q.reshape(N, L, head_num, head_dim).transpose(0, 2, 1, 3)
    K = K.reshape(N, L, head_num, head_dim).transpose(0, 2, 1, 3)
    V = V.reshape(N, L, head_num, head_dim).transpose(0, 2, 1, 3)
    scores = jnp.einsum("nhld,nhmd->nhlm", Q, K) / jnp.sqrt(jnp.float32(head_dim))
    attn = jax.nn.softmax(scores, axis=-1)
    out = jnp.einsum("nhlm,nhmd->nhld", attn, V)
    return out.transpose(0, 2, 1, 3).reshape(N, L, head_num * head_dim)


if __name__ == "__main__":
    # Small shapes implied by the module: batch=2, seq=8, embedding_dim=32,
    # head_num=4, head_dim=8 -> output_dim=32.
    N, L, E = 2, 8, 32
    head_num, head_dim = 4, 8
    out_dim = head_num * head_dim

    key = jax.random.PRNGKey(0)
    k_qs, k_ks, k_vs, k_wq, k_bq, k_wk, k_bk, k_wv, k_bv = jax.random.split(key, 9)

    Q_seq = jax.random.normal(k_qs, (N, L, E), dtype=jnp.float32)
    K_seq = jax.random.normal(k_ks, (N, L, E), dtype=jnp.float32)
    V_seq = jax.random.normal(k_vs, (N, L, E), dtype=jnp.float32)

    # PyTorch Linear stores weight (out, in); we store the transpose (in, out)
    # so the kernel computes x @ W.
    bound = 1.0 / math.sqrt(E)
    params = {
        "wq": jax.random.uniform(k_wq, (E, out_dim), minval=-bound, maxval=bound),
        "bq": jax.random.uniform(k_bq, (out_dim,), minval=-bound, maxval=bound),
        "wk": jax.random.uniform(k_wk, (E, out_dim), minval=-bound, maxval=bound),
        "bk": jax.random.uniform(k_bk, (out_dim,), minval=-bound, maxval=bound),
        "wv": jax.random.uniform(k_wv, (E, out_dim), minval=-bound, maxval=bound),
        "bv": jax.random.uniform(k_bv, (out_dim,), minval=-bound, maxval=bound),
    }

    # One-time parameter prep (scale folding + bias stacking).  Demo stays f32
    # for tight parity with the PyTorch reference; pass dtype=jnp.bfloat16
    # here (and cast the activations once) for production bf16 MXU operands.
    prepared = prepare_params(params, head_dim=head_dim)

    out = self_attention(Q_seq, K_seq, V_seq, prepared,
                         head_num=head_num, head_dim=head_dim)
    out = jax.block_until_ready(out)

    ref = _reference(Q_seq, K_seq, V_seq, params,
                     head_num=head_num, head_dim=head_dim)
    assert out.shape == (N, L, out_dim), out.shape
    max_err = float(jnp.max(jnp.abs(out - ref)))
    # Exact-division softmax + all-f32 math: only rounding-order differences
    # (scale folded into WQ) remain.
    assert jnp.allclose(out, ref, atol=2e-4, rtol=2e-4), max_err

    print("KERNEL_OK")
</pallas_src>

<mosaic_0001>
module attributes {stable_mosaic.version = 11 : i64} {
  func.func @_self_attention_kernel(%arg0: memref<2x8x32xf32, #tpu.memory_space<vmem>>, %arg1: memref<2x8x32xf32, #tpu.memory_space<vmem>>, %arg2: memref<2x8x32xf32, #tpu.memory_space<vmem>>, %arg3: memref<32x32xf32, #tpu.memory_space<vmem>>, %arg4: memref<32x32xf32, #tpu.memory_space<vmem>>, %arg5: memref<32x32xf32, #tpu.memory_space<vmem>>, %arg6: memref<3x32xf32, #tpu.memory_space<vmem>>, %arg7: memref<2x8x32xf32, #tpu.memory_space<vmem>>) attributes {dimension_semantics = [], scalar_prefetch = 0 : i64, scratch_operands = 0 : i64, tpu.core_type = #tpu.core_type<tc>} {
    %c0 = arith.constant 0 : index
    %c0_0 = arith.constant 0 : index
    %0 = vector.load %arg6[%c0, %c0_0] : memref<3x32xf32, #tpu.memory_space<vmem>>, vector<3x32xf32>
    %1 = vector.extract_strided_slice %0 {offsets = [0, 0], sizes = [1, 32], strides = [1, 1]} : vector<3x32xf32> to vector<1x32xf32>
    %c0_1 = arith.constant 0 : index
    %c0_2 = arith.constant 0 : index
    %c0_3 = arith.constant 0 : index
    %2 = vector.load %arg0[%c0_1, %c0_2, %c0_3] : memref<2x8x32xf32, #tpu.memory_space<vmem>>, vector<2x8x32xf32>
    %3 = vector.shape_cast %2 : vector<2x8x32xf32> to vector<16x32xf32>
    %c0_4 = arith.constant 0 : index
    %c0_5 = arith.constant 0 : index
    %4 = vector.load %arg3[%c0_4, %c0_5] : memref<32x32xf32, #tpu.memory_space<vmem>>, vector<32x32xf32>
    %cst = arith.constant dense<0.000000e+00> : vector<16x32xf32>
    %5 = tpu.matmul %3, %4, %cst {dimension_numbers = #tpu.dot_dimension_numbers<[1], [0], [0], [1], [0, 0, 1, 1], [], []>} : vector<16x32xf32>, vector<32x32xf32>, vector<16x32xf32> -> vector<16x32xf32>
    %6 = vector.broadcast %1 : vector<1x32xf32> to vector<16x32xf32>
    %7 = arith.addf %5, %6 : vector<16x32xf32>
    %8 = vector.shape_cast %7 : vector<16x32xf32> to vector<2x8x32xf32>
    %9 = vector.extract_strided_slice %0 {offsets = [1, 0], sizes = [1, 32], strides = [1, 1]} : vector<3x32xf32> to vector<1x32xf32>
    %c0_6 = arith.constant 0 : index
    %c0_7 = arith.constant 0 : index
    %c0_8 = arith.constant 0 : index
    %10 = vector.load %arg1[%c0_6, %c0_7, %c0_8] : memref<2x8x32xf32, #tpu.memory_space<vmem>>, vector<2x8x32xf32>
    %11 = vector.shape_cast %10 : vector<2x8x32xf32> to vector<16x32xf32>
    %c0_9 = arith.constant 0 : index
    %c0_10 = arith.constant 0 : index
    %12 = vector.load %arg4[%c0_9, %c0_10] : memref<32x32xf32, #tpu.memory_space<vmem>>, vector<32x32xf32>
    %cst_11 = arith.constant dense<0.000000e+00> : vector<16x32xf32>
    %13 = tpu.matmul %11, %12, %cst_11 {dimension_numbers = #tpu.dot_dimension_numbers<[1], [0], [0], [1], [0, 0, 1, 1], [], []>} : vector<16x32xf32>, vector<32x32xf32>, vector<16x32xf32> -> vector<16x32xf32>
    %14 = vector.broadcast %9 : vector<1x32xf32> to vector<16x32xf32>
    %15 = arith.addf %13, %14 : vector<16x32xf32>
    %16 = vector.shape_cast %15 : vector<16x32xf32> to vector<2x8x32xf32>
    %17 = vector.extract_strided_slice %0 {offsets = [2, 0], sizes = [1, 32], strides = [1, 1]} : vector<3x32xf32> to vector<1x32xf32>
    %c0_12 = arith.constant 0 : index
    %c0_13 = arith.constant 0 : index
    %c0_14 = arith.constant 0 : index
    %18 = vector.load %arg2[%c0_12, %c0_13, %c0_14] : memref<2x8x32xf32, #tpu.memory_space<vmem>>, vector<2x8x32xf32>
    %19 = vector.shape_cast %18 : vector<2x8x32xf32> to vector<16x32xf32>
    %c0_15 = arith.constant 0 : index
    %c0_16 = arith.constant 0 : index
    %20 = vector.load %arg5[%c0_15, %c0_16] : memref<32x32xf32, #tpu.memory_space<vmem>>, vector<32x32xf32>
    %cst_17 = arith.constant dense<0.000000e+00> : vector<16x32xf32>
    %21 = tpu.matmul %19, %20, %cst_17 {dimension_numbers = #tpu.dot_dimension_numbers<[1], [0], [0], [1], [0, 0, 1, 1], [], []>} : vector<16x32xf32>, vector<32x32xf32>, vector<16x32xf32> -> vector<16x32xf32>
    %22 = vector.broadcast %17 : vector<1x32xf32> to vector<16x32xf32>
    %23 = arith.addf %21, %22 : vector<16x32xf32>
    %24 = vector.shape_cast %23 : vector<16x32xf32> to vector<2x8x32xf32>
    %25 = vector.extract_strided_slice %8 {offsets = [0, 0, 0], sizes = [2, 8, 8], strides = [1, 1, 1]} : vector<2x8x32xf32> to vector<2x8x8xf32>
    %26 = vector.extract_strided_slice %8 {offsets = [0, 0, 8], sizes = [2, 8, 8], strides = [1, 1, 1]} : vector<2x8x32xf32> to vector<2x8x8xf32>
    %27 = vector.extract_strided_slice %8 {offsets = [0, 0, 16], sizes = [2, 8, 8], strides = [1, 1, 1]} : vector<2x8x32xf32> to vector<2x8x8xf32>
    %28 = vector.extract_strided_slice %8 {offsets = [0, 0, 24], sizes = [2, 8, 8], strides = [1, 1, 1]} : vector<2x8x32xf32> to vector<2x8x8xf32>
    %29 = tpu.concatenate %25, %26, %27, %28 in 0 : vector<2x8x8xf32>, vector<2x8x8xf32>, vector<2x8x8xf32>, vector<2x8x8xf32> -> vector<8x8x8xf32>
    %30 = vector.extract_strided_slice %16 {offsets = [0, 0, 0], sizes = [2, 8, 8], strides = [1, 1, 1]} : vector<2x8x32xf32> to vector<2x8x8xf32>
    %31 = vector.extract_strided_slice %16 {offsets = [0, 0, 8], sizes = [2, 8, 8], strides = [1, 1, 1]} : vector<2x8x32xf32> to vector<2x8x8xf32>
    %32 = vector.extract_strided_slice %16 {offsets = [0, 0, 16], sizes = [2, 8, 8], strides = [1, 1, 1]} : vector<2x8x32xf32> to vector<2x8x8xf32>
    %33 = vector.extract_strided_slice %16 {offsets = [0, 0, 24], sizes = [2, 8, 8], strides = [1, 1, 1]} : vector<2x8x32xf32> to vector<2x8x8xf32>
    %34 = tpu.concatenate %30, %31, %32, %33 in 0 : vector<2x8x8xf32>, vector<2x8x8xf32>, vector<2x8x8xf32>, vector<2x8x8xf32> -> vector<8x8x8xf32>
    %35 = vector.extract_strided_slice %24 {offsets = [0, 0, 0], sizes = [2, 8, 8], strides = [1, 1, 1]} : vector<2x8x32xf32> to vector<2x8x8xf32>
    %36 = vector.extract_strided_slice %24 {offsets = [0, 0, 8], sizes = [2, 8, 8], strides = [1, 1, 1]} : vector<2x8x32xf32> to vector<2x8x8xf32>
    %37 = vector.extract_strided_slice %24 {offsets = [0, 0, 16], sizes = [2, 8, 8], strides = [1, 1, 1]} : vector<2x8x32xf32> to vector<2x8x8xf32>
    %38 = vector.extract_strided_slice %24 {offsets = [0, 0, 24], sizes = [2, 8, 8], strides = [1, 1, 1]} : vector<2x8x32xf32> to vector<2x8x8xf32>
    %39 = tpu.concatenate %35, %36, %37, %38 in 0 : vector<2x8x8xf32>, vector<2x8x8xf32>, vector<2x8x8xf32>, vector<2x8x8xf32> -> vector<8x8x8xf32>
    "tpu.trace_start"() <{level = 10 : i32, message = "bqd,bkd->bqk"}> : () -> ()
    %cst_18 = arith.constant dense<0.000000e+00> : vector<8x8x8xf32>
    %40 = tpu.matmul %29, %34, %cst_18 {dimension_numbers = #tpu.dot_dimension_numbers<[2], [2], [1], [1], [0, 0, 0, 1, 1, 1], [0], [0]>} : vector<8x8x8xf32>, vector<8x8x8xf32>, vector<8x8x8xf32> -> vector<8x8x8xf32>
    "tpu.trace_stop"() : () -> ()
    %cst_19 = arith.constant dense<0xFF800000> : vector<8x8xf32>
    %41 = vector.multi_reduction <maximumf>, %40, %cst_19 [2] : vector<8x8x8xf32> to vector<8x8xf32>
    %42 = vector.shape_cast %41 : vector<8x8xf32> to vector<8x8x1xf32>
    %43 = vector.broadcast %42 : vector<8x8x1xf32> to vector<8x8x8xf32>
    %44 = arith.subf %40, %43 : vector<8x8x8xf32>
    %45 = math.exp %44 : vector<8x8x8xf32>
    %cst_20 = arith.constant dense<0.000000e+00> : vector<8x8xf32>
    %46 = vector.multi_reduction <add>, %45, %cst_20 [2] : vector<8x8x8xf32> to vector<8x8xf32>
    %47 = vector.shape_cast %46 : vector<8x8xf32> to vector<8x8x1xf32>
    %48 = vector.broadcast %47 : vector<8x8x1xf32> to vector<8x8x8xf32>
    %49 = arith.divf %45, %48 : vector<8x8x8xf32>
    "tpu.trace_start"() <{level = 10 : i32, message = "bqk,bkd->bqd"}> : () -> ()
    %cst_21 = arith.constant dense<0.000000e+00> : vector<8x8x8xf32>
    %50 = tpu.matmul %49, %39, %cst_21 {dimension_numbers = #tpu.dot_dimension_numbers<[2], [1], [1], [2], [0, 0, 0, 1, 1, 2], [0], [0]>} : vector<8x8x8xf32>, vector<8x8x8xf32>, vector<8x8x8xf32> -> vector<8x8x8xf32>
    "tpu.trace_stop"() : () -> ()
    %51 = vector.extract_strided_slice %50 {offsets = [0, 0, 0], sizes = [2, 8, 8], strides = [1, 1, 1]} : vector<8x8x8xf32> to vector<2x8x8xf32>
    %52 = vector.extract_strided_slice %50 {offsets = [2, 0, 0], sizes = [2, 8, 8], strides = [1, 1, 1]} : vector<8x8x8xf32> to vector<2x8x8xf32>
    %53 = vector.extract_strided_slice %50 {offsets = [4, 0, 0], sizes = [2, 8, 8], strides = [1, 1, 1]} : vector<8x8x8xf32> to vector<2x8x8xf32>
    %54 = vector.extract_strided_slice %50 {offsets = [6, 0, 0], sizes = [2, 8, 8], strides = [1, 1, 1]} : vector<8x8x8xf32> to vector<2x8x8xf32>
    %55 = tpu.concatenate %51, %52, %53, %54 in 2 : vector<2x8x8xf32>, vector<2x8x8xf32>, vector<2x8x8xf32>, vector<2x8x8xf32> -> vector<2x8x32xf32>
    %c0_22 = arith.constant 0 : index
    %c0_23 = arith.constant 0 : index
    %c0_24 = arith.constant 0 : index
    %56 = vector.load %arg7[%c0_22, %c0_23, %c0_24] : memref<2x8x32xf32, #tpu.memory_space<vmem>>, vector<2x8x32xf32>
    tpu.vector_store %arg7[%c0_22, %c0_23, %c0_24], %55 {strides = array<i32>} : memref<2x8x32xf32, #tpu.memory_space<vmem>>, vector<2x8x32xf32>,
    return
  }
}

</mosaic_0001>

<llo_original>
// kernel: tpu_custom_call.1
$region0: #{tpu_custom_call.1}
  #allocation0 [shape = 'u32[]', space=smem, size = 0x4, offset = 0x4, fixed_abs, tag = 'smem constant byte address 0x4 - core index']
  #allocation1 [shape = 'u32[144,128]{1,0:T(1,128)}', space=vmem, size = 0x12000, scoped, tag = 'internal scratch']
  %s0 = inlined_call_operand.hbm [shape: f32[2,8,32], index: 0, kind: input, shape index: {}]
  %s1 = inlined_call_operand.hbm [shape: f32[2,8,32], index: 1, kind: input, shape index: {}]
  %s2 = inlined_call_operand.hbm [shape: f32[2,8,32], index: 2, kind: input, shape index: {}]
  %s3 = inlined_call_operand.hbm [shape: f32[32,32], index: 3, kind: input, shape index: {}]
  %s4 = inlined_call_operand.hbm [shape: f32[32,32], index: 4, kind: input, shape index: {}]
  %s5 = inlined_call_operand.hbm [shape: f32[32,32], index: 5, kind: input, shape index: {}]
  %s6 = inlined_call_operand.vmem [shape: f32[3,32], index: 6, kind: input, shape index: {}]
  %s7 = inlined_call_operand.hbm [shape: f32[2,8,32], index: 7, kind: output, shape index: {}]
  %s8 = sld [smem:[#allocation0]]
  $region62: #{tpu_custom_call.1} parent=0
    _
  %s10 = ssub.s32 1, %s8
  %s11 = scalar_select 0, %s10, %s8
  $region1: #{tpu_custom_call.1} parent=0
    #allocation2 [shape = 'u8[8192]{0}', space=vmem, size = 0x2000, scoped, tag = 'input window, operand 0, single buffered']
    #allocation3 [shape = 's32[1]{0}', space=sflag, size = 0x4, scoped, tag = 'scoped memory for tpu_custom_call.1']
    #allocation4 [shape = 's32[1]{0}', space=sflag, size = 0x4, scoped, tag = 'scoped memory for tpu_custom_call.1']
    #allocation5 [shape = 'u8[8192]{0}', space=vmem, size = 0x2000, scoped, tag = 'input window, operand 1, single buffered']
    #allocation6 [shape = 's32[1]{0}', space=sflag, size = 0x4, scoped, tag = 'scoped memory for tpu_custom_call.1']
    #allocation7 [shape = 'u8[8192]{0}', space=vmem, size = 0x2000, scoped, tag = 'input window, operand 2, single buffered']
    #allocation8 [shape = 'u8[16384]{0}', space=vmem, size = 0x4000, scoped, tag = 'input window, operand 3, single buffered']
    #allocation9 [shape = 's32[1]{0}', space=sflag, size = 0x4, scoped, tag = 'scoped memory for tpu_custom_call.1']
    #allocation10 [shape = 'u8[16384]{0}', space=vmem, size = 0x4000, scoped, tag = 'input window, operand 4, single buffered']
    #allocation11 [shape = 'u8[16384]{0}', space=vmem, size = 0x4000, scoped, tag = 'input window, operand 5, single buffered']
    #allocation12 [shape = 's32[1]{0}', space=sflag, size = 0x4, scoped, tag = 'scoped memory for tpu_custom_call.1']
    #allocation13 [shape = 'u8[8192]{0}', space=vmem, size = 0x2000, scoped, tag = 'output window, operand 0, single buffered']
    %12 = vsyncpa [#allocation3], 0
    %13 = vsyncpa [#allocation6], 0
    %14 = vsyncpa [#allocation9], 0
    %15 = vsyncpa [#allocation12], 0
    %16 = vsyncpa [#allocation4], 0
    // Predicated region
    $region2: #{tpu_custom_call.1} parent=1 // pred_check
      _
    $region3: #{tpu_custom_call.1} parent=1 // pred_check_branch
      %18 = sbr.rel (0) target = $region5
    $region4: #{tpu_custom_call.1} parent=1 // pred_region
      %s20 = ssub.s32 256, 256
      %21 = vsyncadd [#allocation3], %s20
      %s22 = sshll.u32 [#allocation2], 4
      %s23 = int_to_ptr.vmem [resolvable:$true] %s22
      %28 = dma.hbm_to_vmem [thread:$0]  %s0, 256, %s23, [#allocation3], 128, 128, 8
    $region5: #{tpu_custom_call.1} parent=1 // pred_fallthru
      _
    // Predicated region
    $region6: #{tpu_custom_call.1} parent=1 // pred_check
      _
    $region7: #{tpu_custom_call.1} parent=1 // pred_check_branch
      %30 = sbr.rel (0) target = $region9
    $region8: #{tpu_custom_call.1} parent=1 // pred_region
      %s32 = ssub.s32 256, 256
      %33 = vsyncadd [#allocation6], %s32
      %s34 = sshll.u32 [#allocation5], 4
      %s35 = int_to_ptr.vmem [resolvable:$true] %s34
      %40 = dma.hbm_to_vmem [thread:$0]  %s1, 256, %s35, [#allocation6], 128, 128, 8
    $region9: #{tpu_custom_call.1} parent=1 // pred_fallthru
      _
    // Predicated region
    $region10: #{tpu_custom_call.1} parent=1 // pred_check
      _
    $region11: #{tpu_custom_call.1} parent=1 // pred_check_branch
      %42 = sbr.rel (0) target = $region13
    $region12: #{tpu_custom_call.1} parent=1 // pred_region
      %s44 = ssub.s32 256, 256
      %45 = vsyncadd [#allocation6], %s44
      %s46 = sshll.u32 [#allocation7], 4
      %s47 = int_to_ptr.vmem [resolvable:$true] %s46
      %52 = dma.hbm_to_vmem [thread:$0]  %s2, 256, %s47, [#allocation6], 128, 128, 8
    $region13: #{tpu_custom_call.1} parent=1 // pred_fallthru
      _
    // Predicated region
    $region14: #{tpu_custom_call.1} parent=1 // pred_check
      _
    $region15: #{tpu_custom_call.1} parent=1 // pred_check_branch
      %54 = sbr.rel (0) target = $region17
    $region16: #{tpu_custom_call.1} parent=1 // pred_region
      %s56 = ssub.s32 512, 512
      %57 = vsyncadd [#allocation9], %s56
      %s58 = sshll.u32 [#allocation8], 4
      %s59 = int_to_ptr.vmem [resolvable:$true] %s58
      %64 = dma.hbm_to_vmem [thread:$0]  %s3, 512, %s59, [#allocation9], 128, 128, 8
    $region17: #{tpu_custom_call.1} parent=1 // pred_fallthru
      _
    // Predicated region
    $region18: #{tpu_custom_call.1} parent=1 // pred_check
      _
    $region19: #{tpu_custom_call.1} parent=1 // pred_check_branch
      %66 = sbr.rel (0) target = $region21
    $region20: #{tpu_custom_call.1} parent=1 // pred_region
      %s68 = ssub.s32 512, 512
      %69 = vsyncadd [#allocation9], %s68
      %s70 = sshll.u32 [#allocation10], 4
      %s71 = int_to_ptr.vmem [resolvable:$true] %s70
      %76 = dma.hbm_to_vmem [thread:$0]  %s4, 512, %s71, [#allocation9], 128, 128, 8
    $region21: #{tpu_custom_call.1} parent=1 // pred_fallthru
      _
    // Predicated region
    $region22: #{tpu_custom_call.1} parent=1 // pred_check
      _
    $region23: #{tpu_custom_call.1} parent=1 // pred_check_branch
      %78 = sbr.rel (0) target = $region25
    $region24: #{tpu_custom_call.1} parent=1 // pred_region
      %s80 = ssub.s32 512, 512
      %81 = vsyncadd [#allocation12], %s80
      %s82 = sshll.u32 [#allocation11], 4
      %s83 = int_to_ptr.vmem [resolvable:$true] %s82
      %88 = dma.hbm_to_vmem [thread:$0]  %s5, 512, %s83, [#allocation12], 128, 128, 8
    $region25: #{tpu_custom_call.1} parent=1 // pred_fallthru
      _
    // Predicated region
    $region26: #{tpu_custom_call.1} parent=1 // pred_check
      _
    $region27: #{tpu_custom_call.1} parent=1 // pred_check_branch
      %90 = sbr.rel (0) target = $region29
    $region28: #{tpu_custom_call.1} parent=1 // pred_region
      _
    $region29: #{tpu_custom_call.1} parent=1 // pred_fallthru
      _
    // Predicated region
    $region30: #{tpu_custom_call.1} parent=1 // pred_check
      _
    $region31: #{tpu_custom_call.1} parent=1 // pred_check_branch
      %92 = sbr.rel (0) target = $region33
    $region32: #{tpu_custom_call.1} parent=1 // pred_region
      %93 = dma.done [#allocation3], 256
    $region33: #{tpu_custom_call.1} parent=1 // pred_fallthru
      _
    // Predicated region
    $region34: #{tpu_custom_call.1} parent=1 // pred_check
      _
    $region35: #{tpu_custom_call.1} parent=1 // pred_check_branch
      %95 = sbr.rel (0) target = $region37
    $region36: #{tpu_custom_call.1} parent=1 // pred_region
      %96 = dma.done [#allocation6], 256
    $region37: #{tpu_custom_call.1} parent=1 // pred_fallthru
      _
    // Predicated region
    $region38: #{tpu_custom_call.1} parent=1 // pred_check
      _
    $region39: #{tpu_custom_call.1} parent=1 // pred_check_branch
      %98 = sbr.rel (0) target = $region41
    $region40: #{tpu_custom_call.1} parent=1 // pred_region
      %99 = dma.done [#allocation6], 256
    $region41: #{tpu_custom_call.1} parent=1 // pred_fallthru
      _
    // Predicated region
    $region42: #{tpu_custom_call.1} parent=1 // pred_check
      _
    $region43: #{tpu_custom_call.1} parent=1 // pred_check_branch
      %101 = sbr.rel (0) target = $region45
    $region44: #{tpu_custom_call.1} parent=1 // pred_region
      %102 = dma.done [#allocation9], 512
    $region45: #{tpu_custom_call.1} parent=1 // pred_fallthru
      _
    // Predicated region
    $region46: #{tpu_custom_call.1} parent=1 // pred_check
      _
    $region47: #{tpu_custom_call.1} parent=1 // pred_check_branch
      %104 = sbr.rel (0) target = $region49
    $region48: #{tpu_custom_call.1} parent=1 // pred_region
      %105 = dma.done [#allocation9], 512
    $region49: #{tpu_custom_call.1} parent=1 // pred_fallthru
      _
    // Predicated region
    $region50: #{tpu_custom_call.1} parent=1 // pred_check
      _
    $region51: #{tpu_custom_call.1} parent=1 // pred_check_branch
      %107 = sbr.rel (0) target = $region53
    $region52: #{tpu_custom_call.1} parent=1 // pred_region
      %108 = dma.done [#allocation12], 512
    $region53: #{tpu_custom_call.1} parent=1 // pred_fallthru
      _
    %v109 = vld [vmem:[%s6] sm:$0x7]
    %v110 = vld [vmem:[#allocation2] sm:$0xff]
    %v111 = vld [vmem:[#allocation2 + $0x8] sm:$0xff]
    %v112 = vld [vmem:[#allocation8] sm:$0xff]
    %v113 = vld [vmem:[#allocation8 + $0x8] sm:$0xff]
    %v114 = vld [vmem:[#allocation8 + $0x10] sm:$0xff]
    %v115 = vld [vmem:[#allocation8 + $0x18] sm:$0xff]
    %v116 = vlaneseq
    %v117 = vshrl.u32 %v116, 7
    %v118 = vsub.s32 0, %v117
    %v119 = vrot.slane %v109, %v118
    %vm120 = vcmask 261120
    %v122 = vsel %vm120, %v110, 0
    %v125 = vsel %vm120, %v111, 0
    %127 = vmatprep.subr.mxu0 0.0
    %128 = vmatpush1.msra.mxu0 %v112
    %129 = vmatprep.subr.mxu0 0.0
    %130 = vmatpush1.msra.mxu0 %v113
    %131 = vmatprep.subr.mxu0 0.0
    %132 = vmatpush1.msra.mxu0 %v114
    %133 = vmatprep.subr.mxu0 0.0
    %134 = vmatpush1.msra.mxu0 %v115
    %135 = vmatprep.subr.mxu0 0.0
    %136 = vmatpush1.msra.mxu0 0.0
    %137 = vmatprep.subr.mxu0 0.0
    %138 = vmatpush1.msra.mxu0 0.0
    %139 = vmatprep.subr.mxu0 0.0
    %140 = vmatpush1.msra.mxu0 0.0
    %141 = vmatprep.subr.mxu0 0.0
    %142 = vmatpush1.msra.mxu0 0.0
    %143 = vmatprep.subr.mxu0 0.0
    %144 = vmatpush1.msra.mxu0 0.0
    %145 = vmatprep.subr.mxu0 0.0
    %146 = vmatpush1.msra.mxu0 0.0
    %147 = vmatprep.subr.mxu0 0.0
    %148 = vmatpush1.msra.mxu0 0.0
    %149 = vmatprep.subr.mxu0 0.0
    %150 = vmatpush1.msra.mxu0 0.0
    %151 = vmatprep.subr.mxu0 0.0
    %152 = vmatpush1.msra.mxu0 0.0
    %153 = vmatprep.subr.mxu0 0.0
    %154 = vmatpush1.msra.mxu0 0.0
    %155 = vmatprep.subr.mxu0 0.0
    %156 = vmatpush1.msra.mxu0 0.0
    %157 = vmatprep.subr.mxu0 0.0
    %158 = vmatpush1.msra.mxu0 0.0
    %159 = vmatprep.subr.mxu0 0.0
    %160 = vmatpush1.msra.mxu0 0.0
    %161 = vmatprep.subr.mxu0 0.0
    %162 = vmatpush1.msra.mxu0 0.0
    %163 = vmatprep.subr.mxu0 0.0
    %164 = vmatpush1.msra.mxu0 0.0
    %165 = vmatprep.subr.mxu0 0.0
    %166 = vmatpush1.msra.mxu0 0.0
    %167 = vmatprep.subr.mxu0 0.0
    %168 = vmatpush1.msra.mxu0 0.0
    %169 = vmatprep.subr.mxu0 0.0
    %170 = vmatpush1.msra.mxu0 0.0
    %171 = vmatprep.subr.mxu0 0.0
    %172 = vmatpush1.msra.mxu0 0.0
    %173 = vmatprep.subr.mxu0 0.0
    %174 = vmatpush1.msra.mxu0 0.0
    %175 = vmatprep.subr.mxu0 0.0
    %176 = vmatpush1.msra.mxu0 0.0
    %177 = vmatprep.subr.mxu0 0.0
    %178 = vmatpush1.msra.mxu0 0.0
    %179 = vmatprep.subr.mxu0 0.0
    %180 = vmatpush1.msra.mxu0 0.0
    %181 = vmatprep.subr.mxu0 0.0
    %182 = vmatpush1.msra.mxu0 0.0
    %183 = vmatprep.subr.mxu0 0.0
    %184 = vmatpush1.msra.mxu0 0.0
    %185 = vmatprep.subr.mxu0 0.0
    %186 = vmatpush1.msra.mxu0 0.0
    %187 = vmatprep.subr.mxu0 0.0
    %188 = vmatpush1.msra.mxu0 0.0
    %189 = vmatprep.subr.mxu0 0.0
    %190 = vmatpush1.msra.mxu0 0.0
    %191 = vmatprep.mubr.f32.mxu0 0.0
    %192 = vmatmul.mubr.f32.gmra.mrb[0].mxu0 %v122
    %v193 = vpop.f32.mrb[0].mxu0
    %v194 = vadd.f32 %v119, %v193
    %v195 = vpop.f32.mrb[0].mxu0
    %196 = vmatprep.mubr.f32.mxu0 0.0
    %197 = vmatmul.mubr.f32.gmra.mrb[0].mxu0 %v125
    %v198 = vpop.f32.mrb[0].mxu0
    %v199 = vadd.f32 %v119, %v198
    %v200 = vpop.f32.mrb[0].mxu0
    %201 = vdwg.mxu0
    %v202 = vld [vmem:[#allocation5] sm:$0xff]
    %v203 = vld [vmem:[#allocation5 + $0x8] sm:$0xff]
    %v204 = vld [vmem:[#allocation10] sm:$0xff]
    %v205 = vld [vmem:[#allocation10 + $0x8] sm:$0xff]
    %v206 = vld [vmem:[#allocation10 + $0x10] sm:$0xff]
    %v207 = vld [vmem:[#allocation10 + $0x18] sm:$0xff]
    %v208 = vlaneseq
    %v209 = vshrl.u32 %v208, 7
    %v210 = vsub.s32 1, %v209
    %v211 = vrot.slane %v109, %v210
    %v213 = vsel %vm120, %v202, 0
    %v216 = vsel %vm120, %v203, 0
    %218 = vmatprep.subr.mxu0 0.0
    %219 = vmatpush1.msra.mxu0 %v204
    %220 = vmatprep.subr.mxu0 0.0
    %221 = vmatpush1.msra.mxu0 %v205
    %222 = vmatprep.subr.mxu0 0.0
    %223 = vmatpush1.msra.mxu0 %v206
    %224 = vmatprep.subr.mxu0 0.0
    %225 = vmatpush1.msra.mxu0 %v207
    %226 = vmatprep.subr.mxu0 0.0
    %227 = vmatpush1.msra.mxu0 0.0
    %228 = vmatprep.subr.mxu0 0.0
    %229 = vmatpush1.msra.mxu0 0.0
    %230 = vmatprep.subr.mxu0 0.0
    %231 = vmatpush1.msra.mxu0 0.0
    %232 = vmatprep.subr.mxu0 0.0
    %233 = vmatpush1.msra.mxu0 0.0
    %234 = vmatprep.subr.mxu0 0.0
    %235 = vmatpush1.msra.mxu0 0.0
    %236 = vmatprep.subr.mxu0 0.0
    %237 = vmatpush1.msra.mxu0 0.0
    %238 = vmatprep.subr.mxu0 0.0
    %239 = vmatpush1.msra.mxu0 0.0
    %240 = vmatprep.subr.mxu0 0.0
    %241 = vmatpush1.msra.mxu0 0.0
    %242 = vmatprep.subr.mxu0 0.0
    %243 = vmatpush1.msra.mxu0 0.0
    %244 = vmatprep.subr.mxu0 0.0
    %245 = vmatpush1.msra.mxu0 0.0
    %246 = vmatprep.subr.mxu0 0.0
    %247 = vmatpush1.msra.mxu0 0.0
    %248 = vmatprep.subr.mxu0 0.0
    %249 = vmatpush1.msra.mxu0 0.0
    %250 = vmatprep.subr.mxu0 0.0
    %251 = vmatpush1.msra.mxu0 0.0
    %252 = vmatprep.subr.mxu0 0.0
    %253 = vmatpush1.msra.mxu0 0.0
    %254 = vmatprep.subr.mxu0 0.0
    %255 = vmatpush1.msra.mxu0 0.0
    %256 = vmatprep.subr.mxu0 0.0
    %257 = vmatpush1.msra.mxu0 0.0
    %258 = vmatprep.subr.mxu0 0.0
    %259 = vmatpush1.msra.mxu0 0.0
    %260 = vmatprep.subr.mxu0 0.0
    %261 = vmatpush1.msra.mxu0 0.0
    %262 = vmatprep.subr.mxu0 0.0
    %263 = vmatpush1.msra.mxu0 0.0
    %264 = vmatprep.subr.mxu0 0.0
    %265 = vmatpush1.msra.mxu0 0.0
    %266 = vmatprep.subr.mxu0 0.0
    %267 = vmatpush1.msra.mxu0 0.0
    %268 = vmatprep.subr.mxu0 0.0
    %269 = vmatpush1.msra.mxu0 0.0
    %270 = vmatprep.subr.mxu0 0.0
    %271 = vmatpush1.msra.mxu0 0.0
    %272 = vmatprep.subr.mxu0 0.0
    %273 = vmatpush1.msra.mxu0 0.0
    %274 = vmatprep.subr.mxu0 0.0
    %275 = vmatpush1.msra.mxu0 0.0
    %276 = vmatprep.subr.mxu0 0.0
    %277 = vmatpush1.msra.mxu0 0.0
    %278 = vmatprep.subr.mxu0 0.0
    %279 = vmatpush1.msra.mxu0 0.0
    %280 = vmatprep.subr.mxu0 0.0
    %281 = vmatpush1.msra.mxu0 0.0
    %282 = vmatprep.mubr.f32.mxu0 0.0
    %283 = vmatmul.mubr.f32.gmra.mrb[0].mxu0 %v213
    %v284 = vpop.f32.mrb[0].mxu0
    %v285 = vadd.f32 %v211, %v284
    %v286 = vpop.f32.mrb[0].mxu0
    %287 = vmatprep.mubr.f32.mxu0 0.0
    %288 = vmatmul.mubr.f32.gmra.mrb[0].mxu0 %v216
    %v289 = vpop.f32.mrb[0].mxu0
    %v290 = vadd.f32 %v211, %v289
    %v291 = vpop.f32.mrb[0].mxu0
    %292 = vdwg.mxu0
    %v293 = vld [vmem:[#allocation7] sm:$0xff]
    %v294 = vld [vmem:[#allocation7 + $0x8] sm:$0xff]
    %v295 = vld [vmem:[#allocation11] sm:$0xff]
    %v296 = vld [vmem:[#allocation11 + $0x8] sm:$0xff]
    %v297 = vld [vmem:[#allocation11 + $0x10] sm:$0xff]
    %v298 = vld [vmem:[#allocation11 + $0x18] sm:$0xff]
    %v299 = vlaneseq
    %v300 = vshrl.u32 %v299, 7
    %v301 = vsub.s32 2, %v300
    %v302 = vrot.slane %v109, %v301
    %v304 = vsel %vm120, %v293, 0
    %v307 = vsel %vm120, %v294, 0
    %309 = vmatprep.subr.mxu0 0.0
    %310 = vmatpush1.msra.mxu0 %v295
    %311 = vmatprep.subr.mxu0 0.0
    %312 = vmatpush1.msra.mxu0 %v296
    %313 = vmatprep.subr.mxu0 0.0
    %314 = vmatpush1.msra.mxu0 %v297
    %315 = vmatprep.subr.mxu0 0.0
    %316 = vmatpush1.msra.mxu0 %v298
    %317 = vmatprep.subr.mxu0 0.0
    %318 = vmatpush1.msra.mxu0 0.0
    %319 = vmatprep.subr.mxu0 0.0
    %320 = vmatpush1.msra.mxu0 0.0
    %321 = vmatprep.subr.mxu0 0.0
    %322 = vmatpush1.msra.mxu0 0.0
    %323 = vmatprep.subr.mxu0 0.0
    %324 = vmatpush1.msra.mxu0 0.0
    %325 = vmatprep.subr.mxu0 0.0
    %326 = vmatpush1.msra.mxu0 0.0
    %327 = vmatprep.subr.mxu0 0.0
    %328 = vmatpush1.msra.mxu0 0.0
    %329 = vmatprep.subr.mxu0 0.0
    %330 = vmatpush1.msra.mxu0 0.0
    %331 = vmatprep.subr.mxu0 0.0
    %332 = vmatpush1.msra.mxu0 0.0
    %333 = vmatprep.subr.mxu0 0.0
    %334 = vmatpush1.msra.mxu0 0.0
    %335 = vmatprep.subr.mxu0 0.0
    %336 = vmatpush1.msra.mxu0 0.0
    %337 = vmatprep.subr.mxu0 0.0
    %338 = vmatpush1.msra.mxu0 0.0
    %339 = vmatprep.subr.mxu0 0.0
    %340 = vmatpush1.msra.mxu0 0.0
    %341 = vmatprep.subr.mxu0 0.0
    %342 = vmatpush1.msra.mxu0 0.0
    %343 = vmatprep.subr.mxu0 0.0
    %344 = vmatpush1.msra.mxu0 0.0
    %345 = vmatprep.subr.mxu0 0.0
    %346 = vmatpush1.msra.mxu0 0.0
    %347 = vmatprep.subr.mxu0 0.0
    %348 = vmatpush1.msra.mxu0 0.0
    %349 = vmatprep.subr.mxu0 0.0
    %350 = vmatpush1.msra.mxu0 0.0
    %351 = vmatprep.subr.mxu0 0.0
    %352 = vmatpush1.msra.mxu0 0.0
    %353 = vmatprep.subr.mxu0 0.0
    %354 = vmatpush1.msra.mxu0 0.0
    %355 = vmatprep.subr.mxu0 0.0
    %356 = vmatpush1.msra.mxu0 0.0
    %357 = vmatprep.subr.mxu0 0.0
    %358 = vmatpush1.msra.mxu0 0.0
    %359 = vmatprep.subr.mxu0 0.0
    %360 = vmatpush1.msra.mxu0 0.0
    %361 = vmatprep.subr.mxu0 0.0
    %362 = vmatpush1.msra.mxu0 0.0
    %363 = vmatprep.subr.mxu0 0.0
    %364 = vmatpush1.msra.mxu0 0.0
    %365 = vmatprep.subr.mxu0 0.0
    %366 = vmatpush1.msra.mxu0 0.0
    %367 = vmatprep.subr.mxu0 0.0
    %368 = vmatpush1.msra.mxu0 0.0
    %369 = vmatprep.subr.mxu0 0.0
    %370 = vmatpush1.msra.mxu0 0.0
    %371 = vmatprep.subr.mxu0 0.0
    %372 = vmatpush1.msra.mxu0 0.0
    %373 = vmatprep.mubr.f32.mxu0 0.0
    %374 = vmatmul.mubr.f32.gmra.mrb[0].mxu0 %v304
    %v375 = vpop.f32.mrb[0].mxu0
    %v376 = vadd.f32 %v302, %v375
    %v377 = vpop.f32.mrb[0].mxu0
    %378 = vmatprep.mubr.f32.mxu0 0.0
    %379 = vmatmul.mubr.f32.gmra.mrb[0].mxu0 %v307
    %v380 = vpop.f32.mrb[0].mxu0
    %v381 = vadd.f32 %v302, %v380
    %v382 = vpop.f32.mrb[0].mxu0
    %383 = vdwg.mxu0
    %386 = vrot.lane.b32.xlu0 %v194, 120
    %v387 = vpop.permute.xlu0 %386
    %388 = vrot.lane.b32.xlu0 %v199, 120
    %v389 = vpop.permute.xlu0 %388
    %390 = vrot.lane.b32.xlu0 %v194, 112
    %v391 = vpop.permute.xlu0 %390
    %392 = vrot.lane.b32.xlu0 %v199, 112
    %v393 = vpop.permute.xlu0 %392
    %394 = vrot.lane.b32.xlu0 %v194, 104
    %v395 = vpop.permute.xlu0 %394
    %396 = vrot.lane.b32.xlu0 %v199, 104
    %v397 = vpop.permute.xlu0 %396
    %400 = vrot.lane.b32.xlu0 %v285, 120
    %v401 = vpop.permute.xlu0 %400
    %402 = vrot.lane.b32.xlu0 %v290, 120
    %v403 = vpop.permute.xlu0 %402
    %404 = vrot.lane.b32.xlu0 %v285, 112
    %v405 = vpop.permute.xlu0 %404
    %406 = vrot.lane.b32.xlu0 %v290, 112
    %v407 = vpop.permute.xlu0 %406
    %408 = vrot.lane.b32.xlu0 %v285, 104
    %v409 = vpop.permute.xlu0 %408
    %410 = vrot.lane.b32.xlu0 %v290, 104
    %v411 = vpop.permute.xlu0 %410
    %414 = vrot.lane.b32.xlu0 %v376, 120
    %v415 = vpop.permute.xlu0 %414
    %416 = vrot.lane.b32.xlu0 %v381, 120
    %v417 = vpop.permute.xlu0 %416
    %420 = vrot.lane.b32.xlu0 %v376, 112
    %v421 = vpop.permute.xlu0 %420
    %422 = vrot.lane.b32.xlu0 %v381, 112
    %v423 = vpop.permute.xlu0 %422
    %426 = vrot.lane.b32.xlu0 %v376, 104
    %v427 = vpop.permute.xlu0 %426
    %428 = vrot.lane.b32.xlu0 %v381, 104
    %v429 = vpop.permute.xlu0 %428
    %vm432 = vcmask 64512
    %v433 = vsel %vm432, %v194, 0
    %v435 = vsel %vm432, %v285, 0
    %437 = vmatprep.subr.mxu0 0.0
    %438 = vmatpush1.xpose.msra.mxu0 %v435
    %439 = vmatprep.subr.mxu0 0.0
    %440 = vmatpush1.xpose.msra.mxu0 0.0
    %441 = vmatprep.subr.mxu0 0.0
    %442 = vmatpush1.xpose.msra.mxu0 0.0
    %443 = vmatprep.subr.mxu0 0.0
    %444 = vmatpush1.xpose.msra.mxu0 0.0
    %445 = vmatprep.subr.mxu0 0.0
    %446 = vmatpush1.xpose.msra.mxu0 0.0
    %447 = vmatprep.subr.mxu0 0.0
    %448 = vmatpush1.xpose.msra.mxu0 0.0
    %449 = vmatprep.subr.mxu0 0.0
    %450 = vmatpush1.xpose.msra.mxu0 0.0
    %451 = vmatprep.subr.mxu0 0.0
    %452 = vmatpush1.xpose.msra.mxu0 0.0
    %453 = vmatprep.subr.mxu0 0.0
    %454 = vmatpush1.xpose.msra.mxu0 0.0
    %455 = vmatprep.subr.mxu0 0.0
    %456 = vmatpush1.xpose.msra.mxu0 0.0
    %457 = vmatprep.subr.mxu0 0.0
    %458 = vmatpush1.xpose.msra.mxu0 0.0
    %459 = vmatprep.subr.mxu0 0.0
    %460 = vmatpush1.xpose.msra.mxu0 0.0
    %461 = vmatprep.subr.mxu0 0.0
    %462 = vmatpush1.xpose.msra.mxu0 0.0
    %463 = vmatprep.subr.mxu0 0.0
    %464 = vmatpush1.xpose.msra.mxu0 0.0
    %465 = vmatprep.subr.mxu0 0.0
    %466 = vmatpush1.xpose.msra.mxu0 0.0
    %467 = vmatprep.subr.mxu0 0.0
    %468 = vmatpush1.xpose.msra.mxu0 0.0
    %469 = vmatprep.subr.mxu0 0.0
    %470 = vmatpush1.xpose.msra.mxu0 0.0
    %471 = vmatprep.subr.mxu0 0.0
    %472 = vmatpush1.xpose.msra.mxu0 0.0
    %473 = vmatprep.subr.mxu0 0.0
    %474 = vmatpush1.xpose.msra.mxu0 0.0
    %475 = vmatprep.subr.mxu0 0.0
    %476 = vmatpush1.xpose.msra.mxu0 0.0
    %477 = vmatprep.subr.mxu0 0.0
    %478 = vmatpush1.xpose.msra.mxu0 0.0
    %479 = vmatprep.subr.mxu0 0.0
    %480 = vmatpush1.xpose.msra.mxu0 0.0
    %481 = vmatprep.subr.mxu0 0.0
    %482 = vmatpush1.xpose.msra.mxu0 0.0
    %483 = vmatprep.subr.mxu0 0.0
    %484 = vmatpush1.xpose.msra.mxu0 0.0
    %485 = vmatprep.subr.mxu0 0.0
    %486 = vmatpush1.xpose.msra.mxu0 0.0
    %487 = vmatprep.subr.mxu0 0.0
    %488 = vmatpush1.xpose.msra.mxu0 0.0
    %489 = vmatprep.subr.mxu0 0.0
    %490 = vmatpush1.xpose.msra.mxu0 0.0
    %491 = vmatprep.subr.mxu0 0.0
    %492 = vmatpush1.xpose.msra.mxu0 0.0
    %493 = vmatprep.subr.mxu0 0.0
    %494 = vmatpush1.xpose.msra.mxu0 0.0
    %495 = vmatprep.subr.mxu0 0.0
    %496 = vmatpush1.xpose.msra.mxu0 0.0
    %497 = vmatprep.subr.mxu0 0.0
    %498 = vmatpush1.xpose.msra.mxu0 0.0
    %499 = vmatprep.subr.mxu0 0.0
    %500 = vmatpush1.xpose.msra.mxu0 0.0
    %501 = vmatprep.mubr.f32.mxu0 0.0
    %502 = vmatmul.mubr.f32.gmra.mrb[0].mxu0 %v433
    %v503 = vpop.f32.mrb[0].mxu0
    %v504 = vadd.f32 0.0, %v503
    %v505 = vpop.f32.mrb[0].mxu0
    %506 = vdwg.mxu0
    %v507 = vsel %vm432, %v199, 0
    %v509 = vsel %vm432, %v290, 0
    %511 = vmatprep.subr.mxu0 0.0
    %512 = vmatpush1.xpose.msra.mxu0 %v509
    %513 = vmatprep.subr.mxu0 0.0
    %514 = vmatpush1.xpose.msra.mxu0 0.0
    %515 = vmatprep.subr.mxu0 0.0
    %516 = vmatpush1.xpose.msra.mxu0 0.0
    %517 = vmatprep.subr.mxu0 0.0
    %518 = vmatpush1.xpose.msra.mxu0 0.0
    %519 = vmatprep.subr.mxu0 0.0
    %520 = vmatpush1.xpose.msra.mxu0 0.0
    %521 = vmatprep.subr.mxu0 0.0
    %522 = vmatpush1.xpose.msra.mxu0 0.0
    %523 = vmatprep.subr.mxu0 0.0
    %524 = vmatpush1.xpose.msra.mxu0 0.0
    %525 = vmatprep.subr.mxu0 0.0
    %526 = vmatpush1.xpose.msra.mxu0 0.0
    %527 = vmatprep.subr.mxu0 0.0
    %528 = vmatpush1.xpose.msra.mxu0 0.0
    %529 = vmatprep.subr.mxu0 0.0
    %530 = vmatpush1.xpose.msra.mxu0 0.0
    %531 = vmatprep.subr.mxu0 0.0
    %532 = vmatpush1.xpose.msra.mxu0 0.0
    %533 = vmatprep.subr.mxu0 0.0
    %534 = vmatpush1.xpose.msra.mxu0 0.0
    %535 = vmatprep.subr.mxu0 0.0
    %536 = vmatpush1.xpose.msra.mxu0 0.0
    %537 = vmatprep.subr.mxu0 0.0
    %538 = vmatpush1.xpose.msra.mxu0 0.0
    %539 = vmatprep.subr.mxu0 0.0
    %540 = vmatpush1.xpose.msra.mxu0 0.0
    %541 = vmatprep.subr.mxu0 0.0
    %542 = vmatpush1.xpose.msra.mxu0 0.0
    %543 = vmatprep.subr.mxu0 0.0
    %544 = vmatpush1.xpose.msra.mxu0 0.0
    %545 = vmatprep.subr.mxu0 0.0
    %546 = vmatpush1.xpose.msra.mxu0 0.0
    %547 = vmatprep.subr.mxu0 0.0
    %548 = vmatpush1.xpose.msra.mxu0 0.0
    %549 = vmatprep.subr.mxu0 0.0
    %550 = vmatpush1.xpose.msra.mxu0 0.0
    %551 = vmatprep.subr.mxu0 0.0
    %552 = vmatpush1.xpose.msra.mxu0 0.0
    %553 = vmatprep.subr.mxu0 0.0
    %554 = vmatpush1.xpose.msra.mxu0 0.0
    %555 = vmatprep.subr.mxu0 0.0
    %556 = vmatpush1.xpose.msra.mxu0 0.0
    %557 = vmatprep.subr.mxu0 0.0
    %558 = vmatpush1.xpose.msra.mxu0 0.0
    %559 = vmatprep.subr.mxu0 0.0
    %560 = vmatpush1.xpose.msra.mxu0 0.0
    %561 = vmatprep.subr.mxu0 0.0
    %562 = vmatpush1.xpose.msra.mxu0 0.0
    %563 = vmatprep.subr.mxu0 0.0
    %564 = vmatpush1.xpose.msra.mxu0 0.0
    %565 = vmatprep.subr.mxu0 0.0
    %566 = vmatpush1.xpose.msra.mxu0 0.0
    %567 = vmatprep.subr.mxu0 0.0
    %568 = vmatpush1.xpose.msra.mxu0 0.0
    %569 = vmatprep.subr.mxu0 0.0
    %570 = vmatpush1.xpose.msra.mxu0 0.0
    %571 = vmatprep.subr.mxu0 0.0
    %572 = vmatpush1.xpose.msra.mxu0 0.0
    %573 = vmatprep.subr.mxu0 0.0
    %574 = vmatpush1.xpose.msra.mxu0 0.0
    %575 = vmatprep.mubr.f32.mxu0 0.0
    %576 = vmatmul.mubr.f32.gmra.mrb[0].mxu0 %v507
    %v577 = vpop.f32.mrb[0].mxu0
    %v578 = vadd.f32 0.0, %v577
    %v579 = vpop.f32.mrb[0].mxu0
    %580 = vdwg.mxu0
    %v581 = vsel %vm432, %v387, 0
    %v583 = vsel %vm432, %v401, 0
    %585 = vmatprep.subr.mxu0 0.0
    %586 = vmatpush1.xpose.msra.mxu0 %v583
    %587 = vmatprep.subr.mxu0 0.0
    %588 = vmatpush1.xpose.msra.mxu0 0.0
    %589 = vmatprep.subr.mxu0 0.0
    %590 = vmatpush1.xpose.msra.mxu0 0.0
    %591 = vmatprep.subr.mxu0 0.0
    %592 = vmatpush1.xpose.msra.mxu0 0.0
    %593 = vmatprep.subr.mxu0 0.0
    %594 = vmatpush1.xpose.msra.mxu0 0.0
    %595 = vmatprep.subr.mxu0 0.0
    %596 = vmatpush1.xpose.msra.mxu0 0.0
    %597 = vmatprep.subr.mxu0 0.0
    %598 = vmatpush1.xpose.msra.mxu0 0.0
    %599 = vmatprep.subr.mxu0 0.0
    %600 = vmatpush1.xpose.msra.mxu0 0.0
    %601 = vmatprep.subr.mxu0 0.0
    %602 = vmatpush1.xpose.msra.mxu0 0.0
    %603 = vmatprep.subr.mxu0 0.0
    %604 = vmatpush1.xpose.msra.mxu0 0.0
    %605 = vmatprep.subr.mxu0 0.0
    %606 = vmatpush1.xpose.msra.mxu0 0.0
    %607 = vmatprep.subr.mxu0 0.0
    %608 = vmatpush1.xpose.msra.mxu0 0.0
    %609 = vmatprep.subr.mxu0 0.0
    %610 = vmatpush1.xpose.msra.mxu0 0.0
    %611 = vmatprep.subr.mxu0 0.0
    %612 = vmatpush1.xpose.msra.mxu0 0.0
    %613 = vmatprep.subr.mxu0 0.0
    %614 = vmatpush1.xpose.msra.mxu0 0.0
    %615 = vmatprep.subr.mxu0 0.0
    %616 = vmatpush1.xpose.msra.mxu0 0.0
    %617 = vmatprep.subr.mxu0 0.0
    %618 = vmatpush1.xpose.msra.mxu0 0.0
    %619 = vmatprep.subr.mxu0 0.0
    %620 = vmatpush1.xpose.msra.mxu0 0.0
    %621 = vmatprep.subr.mxu0 0.0
    %622 = vmatpush1.xpose.msra.mxu0 0.0
    %623 = vmatprep.subr.mxu0 0.0
    %624 = vmatpush1.xpose.msra.mxu0 0.0
    %625 = vmatprep.subr.mxu0 0.0
    %626 = vmatpush1.xpose.msra.mxu0 0.0
    %627 = vmatprep.subr.mxu0 0.0
    %628 = vmatpush1.xpose.msra.mxu0 0.0
    %629 = vmatprep.subr.mxu0 0.0
    %630 = vmatpush1.xpose.msra.mxu0 0.0
    %631 = vmatprep.subr.mxu0 0.0
    %632 = vmatpush1.xpose.msra.mxu0 0.0
    %633 = vmatprep.subr.mxu0 0.0
    %634 = vmatpush1.xpose.msra.mxu0 0.0
    %635 = vmatprep.subr.mxu0 0.0
    %636 = vmatpush1.xpose.msra.mxu0 0.0
    %637 = vmatprep.subr.mxu0 0.0
    %638 = vmatpush1.xpose.msra.mxu0 0.0
    %639 = vmatprep.subr.mxu0 0.0
    %640 = vmatpush1.xpose.msra.mxu0 0.0
    %641 = vmatprep.subr.mxu0 0.0
    %642 = vmatpush1.xpose.msra.mxu0 0.0
    %643 = vmatprep.subr.mxu0 0.0
    %644 = vmatpush1.xpose.msra.mxu0 0.0
    %645 = vmatprep.subr.mxu0 0.0
    %646 = vmatpush1.xpose.msra.mxu0 0.0
    %647 = vmatprep.subr.mxu0 0.0
    %648 = vmatpush1.xpose.msra.mxu0 0.0
    %649 = vmatprep.mubr.f32.mxu0 0.0
    %650 = vmatmul.mubr.f32.gmra.mrb[0].mxu0 %v581
    %v651 = vpop.f32.mrb[0].mxu0
    %v652 = vadd.f32 0.0, %v651
    %v653 = vpop.f32.mrb[0].mxu0
    %654 = vdwg.mxu0
    %v655 = vsel %vm432, %v389, 0
    %v657 = vsel %vm432, %v403, 0
    %659 = vmatprep.subr.mxu0 0.0
    %660 = vmatpush1.xpose.msra.mxu0 %v657
    %661 = vmatprep.subr.mxu0 0.0
    %662 = vmatpush1.xpose.msra.mxu0 0.0
    %663 = vmatprep.subr.mxu0 0.0
    %664 = vmatpush1.xpose.msra.mxu0 0.0
    %665 = vmatprep.subr.mxu0 0.0
    %666 = vmatpush1.xpose.msra.mxu0 0.0
    %667 = vmatprep.subr.mxu0 0.0
    %668 = vmatpush1.xpose.msra.mxu0 0.0
    %669 = vmatprep.subr.mxu0 0.0
    %670 = vmatpush1.xpose.msra.mxu0 0.0
    %671 = vmatprep.subr.mxu0 0.0
    %672 = vmatpush1.xpose.msra.mxu0 0.0
    %673 = vmatprep.subr.mxu0 0.0
    %674 = vmatpush1.xpose.msra.mxu0 0.0
    %675 = vmatprep.subr.mxu0 0.0
    %676 = vmatpush1.xpose.msra.mxu0 0.0
    %677 = vmatprep.subr.mxu0 0.0
    %678 = vmatpush1.xpose.msra.mxu0 0.0
    %679 = vmatprep.subr.mxu0 0.0
    %680 = vmatpush1.xpose.msra.mxu0 0.0
    %681 = vmatprep.subr.mxu0 0.0
    %682 = vmatpush1.xpose.msra.mxu0 0.0
    %683 = vmatprep.subr.mxu0 0.0
    %684 = vmatpush1.xpose.msra.mxu0 0.0
    %685 = vmatprep.subr.mxu0 0.0
    %686 = vmatpush1.xpose.msra.mxu0 0.0
    %687 = vmatprep.subr.mxu0 0.0
    %688 = vmatpush1.xpose.msra.mxu0 0.0
    %689 = vmatprep.subr.mxu0 0.0
    %690 = vmatpush1.xpose.msra.mxu0 0.0
    %691 = vmatprep.subr.mxu0 0.0
    %692 = vmatpush1.xpose.msra.mxu0 0.0
    %693 = vmatprep.subr.mxu0 0.0
    %694 = vmatpush1.xpose.msra.mxu0 0.0
    %695 = vmatprep.subr.mxu0 0.0
    %696 = vmatpush1.xpose.msra.mxu0 0.0
    %697 = vmatprep.subr.mxu0 0.0
    %698 = vmatpush1.xpose.msra.mxu0 0.0
    %699 = vmatprep.subr.mxu0 0.0
    %700 = vmatpush1.xpose.msra.mxu0 0.0
    %701 = vmatprep.subr.mxu0 0.0
    %702 = vmatpush1.xpose.msra.mxu0 0.0
    %703 = vmatprep.subr.mxu0 0.0
    %704 = vmatpush1.xpose.msra.mxu0 0.0
    %705 = vmatprep.subr.mxu0 0.0
    %706 = vmatpush1.xpose.msra.mxu0 0.0
    %707 = vmatprep.subr.mxu0 0.0
    %708 = vmatpush1.xpose.msra.mxu0 0.0
    %709 = vmatprep.subr.mxu0 0.0
    %710 = vmatpush1.xpose.msra.mxu0 0.0
    %711 = vmatprep.subr.mxu0 0.0
    %712 = vmatpush1.xpose.msra.mxu0 0.0
    %713 = vmatprep.subr.mxu0 0.0
    %714 = vmatpush1.xpose.msra.mxu0 0.0
    %715 = vmatprep.subr.mxu0 0.0
    %716 = vmatpush1.xpose.msra.mxu0 0.0
    %717 = vmatprep.subr.mxu0 0.0
    %718 = vmatpush1.xpose.msra.mxu0 0.0
    %719 = vmatprep.subr.mxu0 0.0
    %720 = vmatpush1.xpose.msra.mxu0 0.0
    %721 = vmatprep.subr.mxu0 0.0
    %722 = vmatpush1.xpose.msra.mxu0 0.0
    %723 = vmatprep.mubr.f32.mxu0 0.0
    %724 = vmatmul.mubr.f32.gmra.mrb[0].mxu0 %v655
    %v725 = vpop.f32.mrb[0].mxu0
    %v726 = vadd.f32 0.0, %v725
    %v727 = vpop.f32.mrb[0].mxu0
    %728 = vdwg.mxu0
    %v729 = vsel %vm432, %v391, 0
    %v731 = vsel %vm432, %v405, 0
    %733 = vmatprep.subr.mxu0 0.0
    %734 = vmatpush1.xpose.msra.mxu0 %v731
    %735 = vmatprep.subr.mxu0 0.0
    %736 = vmatpush1.xpose.msra.mxu0 0.0
    %737 = vmatprep.subr.mxu0 0.0
    %738 = vmatpush1.xpose.msra.mxu0 0.0
    %739 = vmatprep.subr.mxu0 0.0
    %740 = vmatpush1.xpose.msra.mxu0 0.0
    %741 = vmatprep.subr.mxu0 0.0
    %742 = vmatpush1.xpose.msra.mxu0 0.0
    %743 = vmatprep.subr.mxu0 0.0
    %744 = vmatpush1.xpose.msra.mxu0 0.0
    %745 = vmatprep.subr.mxu0 0.0
    %746 = vmatpush1.xpose.msra.mxu0 0.0
    %747 = vmatprep.subr.mxu0 0.0
    %748 = vmatpush1.xpose.msra.mxu0 0.0
    %749 = vmatprep.subr.mxu0 0.0
    %750 = vmatpush1.xpose.msra.mxu0 0.0
    %751 = vmatprep.subr.mxu0 0.0
    %752 = vmatpush1.xpose.msra.mxu0 0.0
    %753 = vmatprep.subr.mxu0 0.0
    %754 = vmatpush1.xpose.msra.mxu0 0.0
    %755 = vmatprep.subr.mxu0 0.0
    %756 = vmatpush1.xpose.msra.mxu0 0.0
    %757 = vmatprep.subr.mxu0 0.0
    %758 = vmatpush1.xpose.msra.mxu0 0.0
    %759 = vmatprep.subr.mxu0 0.0
    %760 = vmatpush1.xpose.msra.mxu0 0.0
    %761 = vmatprep.subr.mxu0 0.0
    %762 = vmatpush1.xpose.msra.mxu0 0.0
    %763 = vmatprep.subr.mxu0 0.0
    %764 = vmatpush1.xpose.msra.mxu0 0.0
    %765 = vmatprep.subr.mxu0 0.0
    %766 = vmatpush1.xpose.msra.mxu0 0.0
    %767 = vmatprep.subr.mxu0 0.0
    %768 = vmatpush1.xpose.msra.mxu0 0.0
    %769 = vmatprep.subr.mxu0 0.0
    %770 = vmatpush1.xpose.msra.mxu0 0.0
    %771 = vmatprep.subr.mxu0 0.0
    %772 = vmatpush1.xpose.msra.mxu0 0.0
    %773 = vmatprep.subr.mxu0 0.0
    %774 = vmatpush1.xpose.msra.mxu0 0.0
    %775 = vmatprep.subr.mxu0 0.0
    %776 = vmatpush1.xpose.msra.mxu0 0.0
    %777 = vmatprep.subr.mxu0 0.0
    %778 = vmatpush1.xpose.msra.mxu0 0.0
    %779 = vmatprep.subr.mxu0 0.0
    %780 = vmatpush1.xpose.msra.mxu0 0.0
    %781 = vmatprep.subr.mxu0 0.0
    %782 = vmatpush1.xpose.msra.mxu0 0.0
    %783 = vmatprep.subr.mxu0 0.0
    %784 = vmatpush1.xpose.msra.mxu0 0.0
    %785 = vmatprep.subr.mxu0 0.0
    %786 = vmatpush1.xpose.msra.mxu0 0.0
    %787 = vmatprep.subr.mxu0 0.0
    %788 = vmatpush1.xpose.msra.mxu0 0.0
    %789 = vmatprep.subr.mxu0 0.0
    %790 = vmatpush1.xpose.msra.mxu0 0.0
    %791 = vmatprep.subr.mxu0 0.0
    %792 = vmatpush1.xpose.msra.mxu0 0.0
    %793 = vmatprep.subr.mxu0 0.0
    %794 = vmatpush1.xpose.msra.mxu0 0.0
    %795 = vmatprep.subr.mxu0 0.0
    %796 = vmatpush1.xpose.msra.mxu0 0.0
    %797 = vmatprep.mubr.f32.mxu0 0.0
    %798 = vmatmul.mubr.f32.gmra.mrb[0].mxu0 %v729
    %v799 = vpop.f32.mrb[0].mxu0
    %v800 = vadd.f32 0.0, %v799
    %v801 = vpop.f32.mrb[0].mxu0
    %802 = vdwg.mxu0
    %v803 = vsel %vm432, %v393, 0
    %v805 = vsel %vm432, %v407, 0
    %807 = vmatprep.subr.mxu0 0.0
    %808 = vmatpush1.xpose.msra.mxu0 %v805
    %809 = vmatprep.subr.mxu0 0.0
    %810 = vmatpush1.xpose.msra.mxu0 0.0
    %811 = vmatprep.subr.mxu0 0.0
    %812 = vmatpush1.xpose.msra.mxu0 0.0
    %813 = vmatprep.subr.mxu0 0.0
    %814 = vmatpush1.xpose.msra.mxu0 0.0
    %815 = vmatprep.subr.mxu0 0.0
    %816 = vmatpush1.xpose.msra.mxu0 0.0
    %817 = vmatprep.subr.mxu0 0.0
    %818 = vmatpush1.xpose.msra.mxu0 0.0
    %819 = vmatprep.subr.mxu0 0.0
    %820 = vmatpush1.xpose.msra.mxu0 0.0
    %821 = vmatprep.subr.mxu0 0.0
    %822 = vmatpush1.xpose.msra.mxu0 0.0
    %823 = vmatprep.subr.mxu0 0.0
    %824 = vmatpush1.xpose.msra.mxu0 0.0
    %825 = vmatprep.subr.mxu0 0.0
    %826 = vmatpush1.xpose.msra.mxu0 0.0
    %827 = vmatprep.subr.mxu0 0.0
    %828 = vmatpush1.xpose.msra.mxu0 0.0
    %829 = vmatprep.subr.mxu0 0.0
    %830 = vmatpush1.xpose.msra.mxu0 0.0
    %831 = vmatprep.subr.mxu0 0.0
    %832 = vmatpush1.xpose.msra.mxu0 0.0
    %833 = vmatprep.subr.mxu0 0.0
    %834 = vmatpush1.xpose.msra.mxu0 0.0
    %835 = vmatprep.subr.mxu0 0.0
    %836 = vmatpush1.xpose.msra.mxu0 0.0
    %837 = vmatprep.subr.mxu0 0.0
    %838 = vmatpush1.xpose.msra.mxu0 0.0
    %839 = vmatprep.subr.mxu0 0.0
    %840 = vmatpush1.xpose.msra.mxu0 0.0
    %841 = vmatprep.subr.mxu0 0.0
    %842 = vmatpush1.xpose.msra.mxu0 0.0
    %843 = vmatprep.subr.mxu0 0.0
    %844 = vmatpush1.xpose.msra.mxu0 0.0
    %845 = vmatprep.subr.mxu0 0.0
    %846 = vmatpush1.xpose.msra.mxu0 0.0
    %847 = vmatprep.subr.mxu0 0.0
    %848 = vmatpush1.xpose.msra.mxu0 0.0
    %849 = vmatprep.subr.mxu0 0.0
    %850 = vmatpush1.xpose.msra.mxu0 0.0
    %851 = vmatprep.subr.mxu0 0.0
    %852 = vmatpush1.xpose.msra.mxu0 0.0
    %853 = vmatprep.subr.mxu0 0.0
    %854 = vmatpush1.xpose.msra.mxu0 0.0
    %855 = vmatprep.subr.mxu0 0.0
    %856 = vmatpush1.xpose.msra.mxu0 0.0
    %857 = vmatprep.subr.mxu0 0.0
    %858 = vmatpush1.xpose.msra.mxu0 0.0
    %859 = vmatprep.subr.mxu0 0.0
    %860 = vmatpush1.xpose.msra.mxu0 0.0
    %861 = vmatprep.subr.mxu0 0.0
    %862 = vmatpush1.xpose.msra.mxu0 0.0
    %863 = vmatprep.subr.mxu0 0.0
    %864 = vmatpush1.xpose.msra.mxu0 0.0
    %865 = vmatprep.subr.mxu0 0.0
    %866 = vmatpush1.xpose.msra.mxu0 0.0
    %867 = vmatprep.subr.mxu0 0.0
    %868 = vmatpush1.xpose.msra.mxu0 0.0
    %869 = vmatprep.subr.mxu0 0.0
    %870 = vmatpush1.xpose.msra.mxu0 0.0
    %871 = vmatprep.mubr.f32.mxu0 0.0
    %872 = vmatmul.mubr.f32.gmra.mrb[0].mxu0 %v803
    %v873 = vpop.f32.mrb[0].mxu0
    %v874 = vadd.f32 0.0, %v873
    %v875 = vpop.f32.mrb[0].mxu0
    %876 = vdwg.mxu0
    %v877 = vsel %vm432, %v395, 0
    %v879 = vsel %vm432, %v409, 0
    %881 = vmatprep.subr.mxu0 0.0
    %882 = vmatpush1.xpose.msra.mxu0 %v879
    %883 = vmatprep.subr.mxu0 0.0
    %884 = vmatpush1.xpose.msra.mxu0 0.0
    %885 = vmatprep.subr.mxu0 0.0
    %886 = vmatpush1.xpose.msra.mxu0 0.0
    %887 = vmatprep.subr.mxu0 0.0
    %888 = vmatpush1.xpose.msra.mxu0 0.0
    %889 = vmatprep.subr.mxu0 0.0
    %890 = vmatpush1.xpose.msra.mxu0 0.0
    %891 = vmatprep.subr.mxu0 0.0
    %892 = vmatpush1.xpose.msra.mxu0 0.0
    %893 = vmatprep.subr.mxu0 0.0
    %894 = vmatpush1.xpose.msra.mxu0 0.0
    %895 = vmatprep.subr.mxu0 0.0
    %896 = vmatpush1.xpose.msra.mxu0 0.0
    %897 = vmatprep.subr.mxu0 0.0
    %898 = vmatpush1.xpose.msra.mxu0 0.0
    %899 = vmatprep.subr.mxu0 0.0
    %900 = vmatpush1.xpose.msra.mxu0 0.0
    %901 = vmatprep.subr.mxu0 0.0
    %902 = vmatpush1.xpose.msra.mxu0 0.0
    %903 = vmatprep.subr.mxu0 0.0
    %904 = vmatpush1.xpose.msra.mxu0 0.0
    %905 = vmatprep.subr.mxu0 0.0
    %906 = vmatpush1.xpose.msra.mxu0 0.0
    %907 = vmatprep.subr.mxu0 0.0
    %908 = vmatpush1.xpose.msra.mxu0 0.0
    %909 = vmatprep.subr.mxu0 0.0
    %910 = vmatpush1.xpose.msra.mxu0 0.0
    %911 = vmatprep.subr.mxu0 0.0
    %912 = vmatpush1.xpose.msra.mxu0 0.0
    %913 = vmatprep.subr.mxu0 0.0
    %914 = vmatpush1.xpose.msra.mxu0 0.0
    %915 = vmatprep.subr.mxu0 0.0
    %916 = vmatpush1.xpose.msra.mxu0 0.0
    %917 = vmatprep.subr.mxu0 0.0
    %918 = vmatpush1.xpose.msra.mxu0 0.0
    %919 = vmatprep.subr.mxu0 0.0
    %920 = vmatpush1.xpose.msra.mxu0 0.0
    %921 = vmatprep.subr.mxu0 0.0
    %922 = vmatpush1.xpose.msra.mxu0 0.0
    %923 = vmatprep.subr.mxu0 0.0
    %924 = vmatpush1.xpose.msra.mxu0 0.0
    %925 = vmatprep.subr.mxu0 0.0
    %926 = vmatpush1.xpose.msra.mxu0 0.0
    %927 = vmatprep.subr.mxu0 0.0
    %928 = vmatpush1.xpose.msra.mxu0 0.0
    %929 = vmatprep.subr.mxu0 0.0
    %930 = vmatpush1.xpose.msra.mxu0 0.0
    %931 = vmatprep.subr.mxu0 0.0
    %932 = vmatpush1.xpose.msra.mxu0 0.0
    %933 = vmatprep.subr.mxu0 0.0
    %934 = vmatpush1.xpose.msra.mxu0 0.0
    %935 = vmatprep.subr.mxu0 0.0
    %936 = vmatpush1.xpose.msra.mxu0 0.0
    %937 = vmatprep.subr.mxu0 0.0
    %938 = vmatpush1.xpose.msra.mxu0 0.0
    %939 = vmatprep.subr.mxu0 0.0
    %940 = vmatpush1.xpose.msra.mxu0 0.0
    %941 = vmatprep.subr.mxu0 0.0
    %942 = vmatpush1.xpose.msra.mxu0 0.0
    %943 = vmatprep.subr.mxu0 0.0
    %944 = vmatpush1.xpose.msra.mxu0 0.0
    %945 = vmatprep.mubr.f32.mxu0 0.0
    %946 = vmatmul.mubr.f32.gmra.mrb[0].mxu0 %v877
    %v947 = vpop.f32.mrb[0].mxu0
    %v948 = vadd.f32 0.0, %v947
    %v949 = vpop.f32.mrb[0].mxu0
    %950 = vdwg.mxu0
    %v951 = vsel %vm432, %v397, 0
    %v953 = vsel %vm432, %v411, 0
    %955 = vmatprep.subr.mxu0 0.0
    %956 = vmatpush1.xpose.msra.mxu0 %v953
    %957 = vmatprep.subr.mxu0 0.0
    %958 = vmatpush1.xpose.msra.mxu0 0.0
    %959 = vmatprep.subr.mxu0 0.0
    %960 = vmatpush1.xpose.msra.mxu0 0.0
    %961 = vmatprep.subr.mxu0 0.0
    %962 = vmatpush1.xpose.msra.mxu0 0.0
    %963 = vmatprep.subr.mxu0 0.0
    %964 = vmatpush1.xpose.msra.mxu0 0.0
    %965 = vmatprep.subr.mxu0 0.0
    %966 = vmatpush1.xpose.msra.mxu0 0.0
    %967 = vmatprep.subr.mxu0 0.0
    %968 = vmatpush1.xpose.msra.mxu0 0.0
    %969 = vmatprep.subr.mxu0 0.0
    %970 = vmatpush1.xpose.msra.mxu0 0.0
    %971 = vmatprep.subr.mxu0 0.0
    %972 = vmatpush1.xpose.msra.mxu0 0.0
    %973 = vmatprep.subr.mxu0 0.0
    %974 = vmatpush1.xpose.msra.mxu0 0.0
    %975 = vmatprep.subr.mxu0 0.0
    %976 = vmatpush1.xpose.msra.mxu0 0.0
    %977 = vmatprep.subr.mxu0 0.0
    %978 = vmatpush1.xpose.msra.mxu0 0.0
    %979 = vmatprep.subr.mxu0 0.0
    %980 = vmatpush1.xpose.msra.mxu0 0.0
    %981 = vmatprep.subr.mxu0 0.0
    %982 = vmatpush1.xpose.msra.mxu0 0.0
    %983 = vmatprep.subr.mxu0 0.0
    %984 = vmatpush1.xpose.msra.mxu0 0.0
    %985 = vmatprep.subr.mxu0 0.0
    %986 = vmatpush1.xpose.msra.mxu0 0.0
    %987 = vmatprep.subr.mxu0 0.0
    %988 = vmatpush1.xpose.msra.mxu0 0.0
    %989 = vmatprep.subr.mxu0 0.0
    %990 = vmatpush1.xpose.msra.mxu0 0.0
    %991 = vmatprep.subr.mxu0 0.0
    %992 = vmatpush1.xpose.msra.mxu0 0.0
    %993 = vmatprep.subr.mxu0 0.0
    %994 = vmatpush1.xpose.msra.mxu0 0.0
    %995 = vmatprep.subr.mxu0 0.0
    %996 = vmatpush1.xpose.msra.mxu0 0.0
    %997 = vmatprep.subr.mxu0 0.0
    %998 = vmatpush1.xpose.msra.mxu0 0.0
    %999 = vmatprep.subr.mxu0 0.0
    %1000 = vmatpush1.xpose.msra.mxu0 0.0
    %1001 = vmatprep.subr.mxu0 0.0
    %1002 = vmatpush1.xpose.msra.mxu0 0.0
    %1003 = vmatprep.subr.mxu0 0.0
    %1004 = vmatpush1.xpose.msra.mxu0 0.0
    %1005 = vmatprep.subr.mxu0 0.0
    %1006 = vmatpush1.xpose.msra.mxu0 0.0
    %1007 = vmatprep.subr.mxu0 0.0
    %1008 = vmatpush1.xpose.msra.mxu0 0.0
    %1009 = vmatprep.subr.mxu0 0.0
    %1010 = vmatpush1.xpose.msra.mxu0 0.0
    %1011 = vmatprep.subr.mxu0 0.0
    %1012 = vmatpush1.xpose.msra.mxu0 0.0
    %1013 = vmatprep.subr.mxu0 0.0
    %1014 = vmatpush1.xpose.msra.mxu0 0.0
    %1015 = vmatprep.subr.mxu0 0.0
    %1016 = vmatpush1.xpose.msra.mxu0 0.0
    %1017 = vmatprep.subr.mxu0 0.0
    %1018 = vmatpush1.xpose.msra.mxu0 0.0
    %1019 = vmatprep.mubr.f32.mxu0 0.0
    %1020 = vmatmul.mubr.f32.gmra.mrb[0].mxu0 %v951
    %v1021 = vpop.f32.mrb[0].mxu0
    %v1022 = vadd.f32 0.0, %v1021
    %v1023 = vpop.f32.mrb[0].mxu0
    %1024 = vdwg.mxu0
    %v1025 = vsel %vm432, %v504, -inf
    %1026 = vmax.xlane.f32.xlu0 %v1025
    %v1027 = vpop.xlane.xlu0 %1026
    %v1028 = vsel %vm432, %v578, -inf
    %1029 = vmax.xlane.f32.xlu0 %v1028
    %v1030 = vpop.xlane.xlu0 %1029
    %v1031 = vsel %vm432, %v652, -inf
    %1032 = vmax.xlane.f32.xlu0 %v1031
    %v1033 = vpop.xlane.xlu0 %1032
    %v1034 = vsel %vm432, %v726, -inf
    %1035 = vmax.xlane.f32.xlu0 %v1034
    %v1036 = vpop.xlane.xlu0 %1035
    %v1037 = vsel %vm432, %v800, -inf
    %1038 = vmax.xlane.f32.xlu0 %v1037
    %v1039 = vpop.xlane.xlu0 %1038
    %v1040 = vsel %vm432, %v874, -inf
    %1041 = vmax.xlane.f32.xlu0 %v1040
    %v1042 = vpop.xlane.xlu0 %1041
    %v1043 = vsel %vm432, %v948, -inf
    %1044 = vmax.xlane.f32.xlu0 %v1043
    %v1045 = vpop.xlane.xlu0 %1044
    %v1046 = vsel %vm432, %v1022, -inf
    %1047 = vmax.xlane.f32.xlu0 %v1046
    %v1048 = vpop.xlane.xlu0 %1047
    %v1049 = vsub.f32 %v504, %v1027
    %v1050 = vsub.f32 %v578, %v1030
    %v1051 = vsub.f32 %v652, %v1033
    %v1052 = vsub.f32 %v726, %v1036
    %v1053 = vsub.f32 %v800, %v1039
    %v1054 = vsub.f32 %v874, %v1042
    %v1055 = vsub.f32 %v948, %v1045
    %v1056 = vsub.f32 %v1022, %v1048
    %v1057 = vmul.f32 %v1049, 1.442695
    %v1058 = vpow.pop %v1057
    %v1059 = vmul.f32 %v1050, 1.442695
    %v1060 = vpow.pop %v1059
    %v1061 = vmul.f32 %v1051, 1.442695
    %v1062 = vpow.pop %v1061
    %v1063 = vmul.f32 %v1052, 1.442695
    %v1064 = vpow.pop %v1063
    %v1065 = vmul.f32 %v1053, 1.442695
    %v1066 = vpow.pop %v1065
    %v1067 = vmul.f32 %v1054, 1.442695
    %v1068 = vpow.pop %v1067
    %v1069 = vmul.f32 %v1055, 1.442695
    %v1070 = vpow.pop %v1069
    %v1071 = vmul.f32 %v1056, 1.442695
    %v1072 = vpow.pop %v1071
    %v1073 = vsel %vm432, %v1058, 0.0
    %1074 = vadd.xlane.f32.xlu0 %v1073
    %v1075 = vpop.xlane.xlu0 %1074
    %v1076 = vsel %vm432, %v1060, 0.0
    %1077 = vadd.xlane.f32.xlu0 %v1076
    %v1078 = vpop.xlane.xlu0 %1077
    %v1079 = vsel %vm432, %v1062, 0.0
    %1080 = vadd.xlane.f32.xlu0 %v1079
    %v1081 = vpop.xlane.xlu0 %1080
    %v1082 = vsel %vm432, %v1064, 0.0
    %1083 = vadd.xlane.f32.xlu0 %v1082
    %v1084 = vpop.xlane.xlu0 %1083
    %v1085 = vsel %vm432, %v1066, 0.0
    %1086 = vadd.xlane.f32.xlu0 %v1085
    %v1087 = vpop.xlane.xlu0 %1086
    %v1088 = vsel %vm432, %v1068, 0.0
    %1089 = vadd.xlane.f32.xlu0 %v1088
    %v1090 = vpop.xlane.xlu0 %1089
    %v1091 = vsel %vm432, %v1070, 0.0
    %1092 = vadd.xlane.f32.xlu0 %v1091
    %v1093 = vpop.xlane.xlu0 %1092
    %v1094 = vsel %vm432, %v1072, 0.0
    %1095 = vadd.xlane.f32.xlu0 %v1094
    %v1096 = vpop.xlane.xlu0 %1095
    %v1097 = vrcp.pop %v1075
    %v1098 = vmul.f32 %v1058, %v1097
    %v1099 = vrcp.pop %v1078
    %v1100 = vmul.f32 %v1060, %v1099
    %v1101 = vrcp.pop %v1081
    %v1102 = vmul.f32 %v1062, %v1101
    %v1103 = vrcp.pop %v1084
    %v1104 = vmul.f32 %v1064, %v1103
    %v1105 = vrcp.pop %v1087
    %v1106 = vmul.f32 %v1066, %v1105
    %v1107 = vrcp.pop %v1090
    %v1108 = vmul.f32 %v1068, %v1107
    %v1109 = vrcp.pop %v1093
    %v1110 = vmul.f32 %v1070, %v1109
    %v1111 = vrcp.pop %v1096
    %v1112 = vmul.f32 %v1072, %v1111
    %v1114 = vsel %vm432, %v1098, 0
    %1116 = vmatprep.subr.mxu0 0.0
    %1117 = vmatpush1.msra.mxu0 %v376
    %1118 = vmatprep.subr.mxu0 0.0
    %1119 = vmatpush1.msra.mxu0 0.0
    %1120 = vmatprep.subr.mxu0 0.0
    %1121 = vmatpush1.msra.mxu0 0.0
    %1122 = vmatprep.subr.mxu0 0.0
    %1123 = vmatpush1.msra.mxu0 0.0
    %1124 = vmatprep.subr.mxu0 0.0
    %1125 = vmatpush1.msra.mxu0 0.0
    %1126 = vmatprep.subr.mxu0 0.0
    %1127 = vmatpush1.msra.mxu0 0.0
    %1128 = vmatprep.subr.mxu0 0.0
    %1129 = vmatpush1.msra.mxu0 0.0
    %1130 = vmatprep.subr.mxu0 0.0
    %1131 = vmatpush1.msra.mxu0 0.0
    %1132 = vmatprep.subr.mxu0 0.0
    %1133 = vmatpush1.msra.mxu0 0.0
    %1134 = vmatprep.subr.mxu0 0.0
    %1135 = vmatpush1.msra.mxu0 0.0
    %1136 = vmatprep.subr.mxu0 0.0
    %1137 = vmatpush1.msra.mxu0 0.0
    %1138 = vmatprep.subr.mxu0 0.0
    %1139 = vmatpush1.msra.mxu0 0.0
    %1140 = vmatprep.subr.mxu0 0.0
    %1141 = vmatpush1.msra.mxu0 0.0
    %1142 = vmatprep.subr.mxu0 0.0
    %1143 = vmatpush1.msra.mxu0 0.0
    %1144 = vmatprep.subr.mxu0 0.0
    %1145 = vmatpush1.msra.mxu0 0.0
    %1146 = vmatprep.subr.mxu0 0.0
    %1147 = vmatpush1.msra.mxu0 0.0
    %1148 = vmatprep.subr.mxu0 0.0
    %1149 = vmatpush1.msra.mxu0 0.0
    %1150 = vmatprep.subr.mxu0 0.0
    %1151 = vmatpush1.msra.mxu0 0.0
    %1152 = vmatprep.subr.mxu0 0.0
    %1153 = vmatpush1.msra.mxu0 0.0
    %1154 = vmatprep.subr.mxu0 0.0
    %1155 = vmatpush1.msra.mxu0 0.0
    %1156 = vmatprep.subr.mxu0 0.0
    %1157 = vmatpush1.msra.mxu0 0.0
    %1158 = vmatprep.subr.mxu0 0.0
    %1159 = vmatpush1.msra.mxu0 0.0
    %1160 = vmatprep.subr.mxu0 0.0
    %1161 = vmatpush1.msra.mxu0 0.0
    %1162 = vmatprep.subr.mxu0 0.0
    %1163 = vmatpush1.msra.mxu0 0.0
    %1164 = vmatprep.subr.mxu0 0.0
    %1165 = vmatpush1.msra.mxu0 0.0
    %1166 = vmatprep.subr.mxu0 0.0
    %1167 = vmatpush1.msra.mxu0 0.0
    %1168 = vmatprep.subr.mxu0 0.0
    %1169 = vmatpush1.msra.mxu0 0.0
    %1170 = vmatprep.subr.mxu0 0.0
    %1171 = vmatpush1.msra.mxu0 0.0
    %1172 = vmatprep.subr.mxu0 0.0
    %1173 = vmatpush1.msra.mxu0 0.0
    %1174 = vmatprep.subr.mxu0 0.0
    %1175 = vmatpush1.msra.mxu0 0.0
    %1176 = vmatprep.subr.mxu0 0.0
    %1177 = vmatpush1.msra.mxu0 0.0
    %1178 = vmatprep.subr.mxu0 0.0
    %1179 = vmatpush1.msra.mxu0 0.0
    %1180 = vmatprep.mubr.f32.mxu0 0.0
    %1181 = vmatmul.mubr.f32.gmra.mrb[0].mxu0 %v1114
    %v1182 = vpop.f32.mrb[0].mxu0
    %v1183 = vadd.f32 0.0, %v1182
    %v1184 = vpop.f32.mrb[0].mxu0
    %1185 = vdwg.mxu0
    %v1187 = vsel %vm432, %v1100, 0
    %1189 = vmatprep.subr.mxu0 0.0
    %1190 = vmatpush1.msra.mxu0 %v381
    %1191 = vmatprep.subr.mxu0 0.0
    %1192 = vmatpush1.msra.mxu0 0.0
    %1193 = vmatprep.subr.mxu0 0.0
    %1194 = vmatpush1.msra.mxu0 0.0
    %1195 = vmatprep.subr.mxu0 0.0
    %1196 = vmatpush1.msra.mxu0 0.0
    %1197 = vmatprep.subr.mxu0 0.0
    %1198 = vmatpush1.msra.mxu0 0.0
    %1199 = vmatprep.subr.mxu0 0.0
    %1200 = vmatpush1.msra.mxu0 0.0
    %1201 = vmatprep.subr.mxu0 0.0
    %1202 = vmatpush1.msra.mxu0 0.0
    %1203 = vmatprep.subr.mxu0 0.0
    %1204 = vmatpush1.msra.mxu0 0.0
    %1205 = vmatprep.subr.mxu0 0.0
    %1206 = vmatpush1.msra.mxu0 0.0
    %1207 = vmatprep.subr.mxu0 0.0
    %1208 = vmatpush1.msra.mxu0 0.0
    %1209 = vmatprep.subr.mxu0 0.0
    %1210 = vmatpush1.msra.mxu0 0.0
    %1211 = vmatprep.subr.mxu0 0.0
    %1212 = vmatpush1.msra.mxu0 0.0
    %1213 = vmatprep.subr.mxu0 0.0
    %1214 = vmatpush1.msra.mxu0 0.0
    %1215 = vmatprep.subr.mxu0 0.0
    %1216 = vmatpush1.msra.mxu0 0.0
    %1217 = vmatprep.subr.mxu0 0.0
    %1218 = vmatpush1.msra.mxu0 0.0
    %1219 = vmatprep.subr.mxu0 0.0
    %1220 = vmatpush1.msra.mxu0 0.0
    %1221 = vmatprep.subr.mxu0 0.0
    %1222 = vmatpush1.msra.mxu0 0.0
    %1223 = vmatprep.subr.mxu0 0.0
    %1224 = vmatpush1.msra.mxu0 0.0
    %1225 = vmatprep.subr.mxu0 0.0
    %1226 = vmatpush1.msra.mxu0 0.0
    %1227 = vmatprep.subr.mxu0 0.0
    %1228 = vmatpush1.msra.mxu0 0.0
    %1229 = vmatprep.subr.mxu0 0.0
    %1230 = vmatpush1.msra.mxu0 0.0
    %1231 = vmatprep.subr.mxu0 0.0
    %1232 = vmatpush1.msra.mxu0 0.0
    %1233 = vmatprep.subr.mxu0 0.0
    %1234 = vmatpush1.msra.mxu0 0.0
    %1235 = vmatprep.subr.mxu0 0.0
    %1236 = vmatpush1.msra.mxu0 0.0
    %1237 = vmatprep.subr.mxu0 0.0
    %1238 = vmatpush1.msra.mxu0 0.0
    %1239 = vmatprep.subr.mxu0 0.0
    %1240 = vmatpush1.msra.mxu0 0.0
    %1241 = vmatprep.subr.mxu0 0.0
    %1242 = vmatpush1.msra.mxu0 0.0
    %1243 = vmatprep.subr.mxu0 0.0
    %1244 = vmatpush1.msra.mxu0 0.0
    %1245 = vmatprep.subr.mxu0 0.0
    %1246 = vmatpush1.msra.mxu0 0.0
    %1247 = vmatprep.subr.mxu0 0.0
    %1248 = vmatpush1.msra.mxu0 0.0
    %1249 = vmatprep.subr.mxu0 0.0
    %1250 = vmatpush1.msra.mxu0 0.0
    %1251 = vmatprep.subr.mxu0 0.0
    %1252 = vmatpush1.msra.mxu0 0.0
    %1253 = vmatprep.mubr.f32.mxu0 0.0
    %1254 = vmatmul.mubr.f32.gmra.mrb[0].mxu0 %v1187
    %v1255 = vpop.f32.mrb[0].mxu0
    %v1256 = vadd.f32 0.0, %v1255
    %v1257 = vpop.f32.mrb[0].mxu0
    %1258 = vdwg.mxu0
    %v1260 = vsel %vm432, %v1102, 0
    %1262 = vmatprep.subr.mxu0 0.0
    %1263 = vmatpush1.msra.mxu0 %v415
    %1264 = vmatprep.subr.mxu0 0.0
    %1265 = vmatpush1.msra.mxu0 0.0
    %1266 = vmatprep.subr.mxu0 0.0
    %1267 = vmatpush1.msra.mxu0 0.0
    %1268 = vmatprep.subr.mxu0 0.0
    %1269 = vmatpush1.msra.mxu0 0.0
    %1270 = vmatprep.subr.mxu0 0.0
    %1271 = vmatpush1.msra.mxu0 0.0
    %1272 = vmatprep.subr.mxu0 0.0
    %1273 = vmatpush1.msra.mxu0 0.0
    %1274 = vmatprep.subr.mxu0 0.0
    %1275 = vmatpush1.msra.mxu0 0.0
    %1276 = vmatprep.subr.mxu0 0.0
    %1277 = vmatpush1.msra.mxu0 0.0
    %1278 = vmatprep.subr.mxu0 0.0
    %1279 = vmatpush1.msra.mxu0 0.0
    %1280 = vmatprep.subr.mxu0 0.0
    %1281 = vmatpush1.msra.mxu0 0.0
    %1282 = vmatprep.subr.mxu0 0.0
    %1283 = vmatpush1.msra.mxu0 0.0
    %1284 = vmatprep.subr.mxu0 0.0
    %1285 = vmatpush1.msra.mxu0 0.0
    %1286 = vmatprep.subr.mxu0 0.0
    %1287 = vmatpush1.msra.mxu0 0.0
    %1288 = vmatprep.subr.mxu0 0.0
    %1289 = vmatpush1.msra.mxu0 0.0
    %1290 = vmatprep.subr.mxu0 0.0
    %1291 = vmatpush1.msra.mxu0 0.0
    %1292 = vmatprep.subr.mxu0 0.0
    %1293 = vmatpush1.msra.mxu0 0.0
    %1294 = vmatprep.subr.mxu0 0.0
    %1295 = vmatpush1.msra.mxu0 0.0
    %1296 = vmatprep.subr.mxu0 0.0
    %1297 = vmatpush1.msra.mxu0 0.0
    %1298 = vmatprep.subr.mxu0 0.0
    %1299 = vmatpush1.msra.mxu0 0.0
    %1300 = vmatprep.subr.mxu0 0.0
    %1301 = vmatpush1.msra.mxu0 0.0
    %1302 = vmatprep.subr.mxu0 0.0
    %1303 = vmatpush1.msra.mxu0 0.0
    %1304 = vmatprep.subr.mxu0 0.0
    %1305 = vmatpush1.msra.mxu0 0.0
    %1306 = vmatprep.subr.mxu0 0.0
    %1307 = vmatpush1.msra.mxu0 0.0
    %1308 = vmatprep.subr.mxu0 0.0
    %1309 = vmatpush1.msra.mxu0 0.0
    %1310 = vmatprep.subr.mxu0 0.0
    %1311 = vmatpush1.msra.mxu0 0.0
    %1312 = vmatprep.subr.mxu0 0.0
    %1313 = vmatpush1.msra.mxu0 0.0
    %1314 = vmatprep.subr.mxu0 0.0
    %1315 = vmatpush1.msra.mxu0 0.0
    %1316 = vmatprep.subr.mxu0 0.0
    %1317 = vmatpush1.msra.mxu0 0.0
    %1318 = vmatprep.subr.mxu0 0.0
    %1319 = vmatpush1.msra.mxu0 0.0
    %1320 = vmatprep.subr.mxu0 0.0
    %1321 = vmatpush1.msra.mxu0 0.0
    %1322 = vmatprep.subr.mxu0 0.0
    %1323 = vmatpush1.msra.mxu0 0.0
    %1324 = vmatprep.subr.mxu0 0.0
    %1325 = vmatpush1.msra.mxu0 0.0
    %1326 = vmatprep.mubr.f32.mxu0 0.0
    %1327 = vmatmul.mubr.f32.gmra.mrb[0].mxu0 %v1260
    %v1328 = vpop.f32.mrb[0].mxu0
    %v1329 = vadd.f32 0.0, %v1328
    %v1330 = vpop.f32.mrb[0].mxu0
    %1331 = vdwg.mxu0
    %v1333 = vsel %vm432, %v1104, 0
    %1335 = vmatprep.subr.mxu0 0.0
    %1336 = vmatpush1.msra.mxu0 %v417
    %1337 = vmatprep.subr.mxu0 0.0
    %1338 = vmatpush1.msra.mxu0 0.0
    %1339 = vmatprep.subr.mxu0 0.0
    %1340 = vmatpush1.msra.mxu0 0.0
    %1341 = vmatprep.subr.mxu0 0.0
    %1342 = vmatpush1.msra.mxu0 0.0
    %1343 = vmatprep.subr.mxu0 0.0
    %1344 = vmatpush1.msra.mxu0 0.0
    %1345 = vmatprep.subr.mxu0 0.0
    %1346 = vmatpush1.msra.mxu0 0.0
    %1347 = vmatprep.subr.mxu0 0.0
    %1348 = vmatpush1.msra.mxu0 0.0
    %1349 = vmatprep.subr.mxu0 0.0
    %1350 = vmatpush1.msra.mxu0 0.0
    %1351 = vmatprep.subr.mxu0 0.0
    %1352 = vmatpush1.msra.mxu0 0.0
    %1353 = vmatprep.subr.mxu0 0.0
    %1354 = vmatpush1.msra.mxu0 0.0
    %1355 = vmatprep.subr.mxu0 0.0
    %1356 = vmatpush1.msra.mxu0 0.0
    %1357 = vmatprep.subr.mxu0 0.0
    %1358 = vmatpush1.msra.mxu0 0.0
    %1359 = vmatprep.subr.mxu0 0.0
    %1360 = vmatpush1.msra.mxu0 0.0
    %1361 = vmatprep.subr.mxu0 0.0
    %1362 = vmatpush1.msra.mxu0 0.0
    %1363 = vmatprep.subr.mxu0 0.0
    %1364 = vmatpush1.msra.mxu0 0.0
    %1365 = vmatprep.subr.mxu0 0.0
    %1366 = vmatpush1.msra.mxu0 0.0
    %1367 = vmatprep.subr.mxu0 0.0
    %1368 = vmatpush1.msra.mxu0 0.0
    %1369 = vmatprep.subr.mxu0 0.0
    %1370 = vmatpush1.msra.mxu0 0.0
    %1371 = vmatprep.subr.mxu0 0.0
    %1372 = vmatpush1.msra.mxu0 0.0
    %1373 = vmatprep.subr.mxu0 0.0
    %1374 = vmatpush1.msra.mxu0 0.0
    %1375 = vmatprep.subr.mxu0 0.0
    %1376 = vmatpush1.msra.mxu0 0.0
    %1377 = vmatprep.subr.mxu0 0.0
    %1378 = vmatpush1.msra.mxu0 0.0
    %1379 = vmatprep.subr.mxu0 0.0
    %1380 = vmatpush1.msra.mxu0 0.0
    %1381 = vmatprep.subr.mxu0 0.0
    %1382 = vmatpush1.msra.mxu0 0.0
    %1383 = vmatprep.subr.mxu0 0.0
    %1384 = vmatpush1.msra.mxu0 0.0
    %1385 = vmatprep.subr.mxu0 0.0
    %1386 = vmatpush1.msra.mxu0 0.0
    %1387 = vmatprep.subr.mxu0 0.0
    %1388 = vmatpush1.msra.mxu0 0.0
    %1389 = vmatprep.subr.mxu0 0.0
    %1390 = vmatpush1.msra.mxu0 0.0
    %1391 = vmatprep.subr.mxu0 0.0
    %1392 = vmatpush1.msra.mxu0 0.0
    %1393 = vmatprep.subr.mxu0 0.0
    %1394 = vmatpush1.msra.mxu0 0.0
    %1395 = vmatprep.subr.mxu0 0.0
    %1396 = vmatpush1.msra.mxu0 0.0
    %1397 = vmatprep.subr.mxu0 0.0
    %1398 = vmatpush1.msra.mxu0 0.0
    %1399 = vmatprep.mubr.f32.mxu0 0.0
    %1400 = vmatmul.mubr.f32.gmra.mrb[0].mxu0 %v1333
    %v1401 = vpop.f32.mrb[0].mxu0
    %v1402 = vadd.f32 0.0, %v1401
    %v1403 = vpop.f32.mrb[0].mxu0
    %1404 = vdwg.mxu0
    %v1406 = vsel %vm432, %v1106, 0
    %1408 = vmatprep.subr.mxu0 0.0
    %1409 = vmatpush1.msra.mxu0 %v421
    %1410 = vmatprep.subr.mxu0 0.0
    %1411 = vmatpush1.msra.mxu0 0.0
    %1412 = vmatprep.subr.mxu0 0.0
    %1413 = vmatpush1.msra.mxu0 0.0
    %1414 = vmatprep.subr.mxu0 0.0
    %1415 = vmatpush1.msra.mxu0 0.0
    %1416 = vmatprep.subr.mxu0 0.0
    %1417 = vmatpush1.msra.mxu0 0.0
    %1418 = vmatprep.subr.mxu0 0.0
    %1419 = vmatpush1.msra.mxu0 0.0
    %1420 = vmatprep.subr.mxu0 0.0
    %1421 = vmatpush1.msra.mxu0 0.0
    %1422 = vmatprep.subr.mxu0 0.0
    %1423 = vmatpush1.msra.mxu0 0.0
    %1424 = vmatprep.subr.mxu0 0.0
    %1425 = vmatpush1.msra.mxu0 0.0
    %1426 = vmatprep.subr.mxu0 0.0
    %1427 = vmatpush1.msra.mxu0 0.0
    %1428 = vmatprep.subr.mxu0 0.0
    %1429 = vmatpush1.msra.mxu0 0.0
    %1430 = vmatprep.subr.mxu0 0.0
    %1431 = vmatpush1.msra.mxu0 0.0
    %1432 = vmatprep.subr.mxu0 0.0
    %1433 = vmatpush1.msra.mxu0 0.0
    %1434 = vmatprep.subr.mxu0 0.0
    %1435 = vmatpush1.msra.mxu0 0.0
    %1436 = vmatprep.subr.mxu0 0.0
    %1437 = vmatpush1.msra.mxu0 0.0
    %1438 = vmatprep.subr.mxu0 0.0
    %1439 = vmatpush1.msra.mxu0 0.0
    %1440 = vmatprep.subr.mxu0 0.0
    %1441 = vmatpush1.msra.mxu0 0.0
    %1442 = vmatprep.subr.mxu0 0.0
    %1443 = vmatpush1.msra.mxu0 0.0
    %1444 = vmatprep.subr.mxu0 0.0
    %1445 = vmatpush1.msra.mxu0 0.0
    %1446 = vmatprep.subr.mxu0 0.0
    %1447 = vmatpush1.msra.mxu0 0.0
    %1448 = vmatprep.subr.mxu0 0.0
    %1449 = vmatpush1.msra.mxu0 0.0
    %1450 = vmatprep.subr.mxu0 0.0
    %1451 = vmatpush1.msra.mxu0 0.0
    %1452 = vmatprep.subr.mxu0 0.0
    %1453 = vmatpush1.msra.mxu0 0.0
    %1454 = vmatprep.subr.mxu0 0.0
    %1455 = vmatpush1.msra.mxu0 0.0
    %1456 = vmatprep.subr.mxu0 0.0
    %1457 = vmatpush1.msra.mxu0 0.0
    %1458 = vmatprep.subr.mxu0 0.0
    %1459 = vmatpush1.msra.mxu0 0.0
    %1460 = vmatprep.subr.mxu0 0.0
    %1461 = vmatpush1.msra.mxu0 0.0
    %1462 = vmatprep.subr.mxu0 0.0
    %1463 = vmatpush1.msra.mxu0 0.0
    %1464 = vmatprep.subr.mxu0 0.0
    %1465 = vmatpush1.msra.mxu0 0.0
    %1466 = vmatprep.subr.mxu0 0.0
    %1467 = vmatpush1.msra.mxu0 0.0
    %1468 = vmatprep.subr.mxu0 0.0
    %1469 = vmatpush1.msra.mxu0 0.0
    %1470 = vmatprep.subr.mxu0 0.0
    %1471 = vmatpush1.msra.mxu0 0.0
    %1472 = vmatprep.mubr.f32.mxu0 0.0
    %1473 = vmatmul.mubr.f32.gmra.mrb[0].mxu0 %v1406
    %v1474 = vpop.f32.mrb[0].mxu0
    %v1475 = vadd.f32 0.0, %v1474
    %v1476 = vpop.f32.mrb[0].mxu0
    %1477 = vdwg.mxu0
    %v1479 = vsel %vm432, %v1108, 0
    %1481 = vmatprep.subr.mxu0 0.0
    %1482 = vmatpush1.msra.mxu0 %v423
    %1483 = vmatprep.subr.mxu0 0.0
    %1484 = vmatpush1.msra.mxu0 0.0
    %1485 = vmatprep.subr.mxu0 0.0
    %1486 = vmatpush1.msra.mxu0 0.0
    %1487 = vmatprep.subr.mxu0 0.0
    %1488 = vmatpush1.msra.mxu0 0.0
    %1489 = vmatprep.subr.mxu0 0.0
    %1490 = vmatpush1.msra.mxu0 0.0
    %1491 = vmatprep.subr.mxu0 0.0
    %1492 = vmatpush1.msra.mxu0 0.0
    %1493 = vmatprep.subr.mxu0 0.0
    %1494 = vmatpush1.msra.mxu0 0.0
    %1495 = vmatprep.subr.mxu0 0.0
    %1496 = vmatpush1.msra.mxu0 0.0
    %1497 = vmatprep.subr.mxu0 0.0
    %1498 = vmatpush1.msra.mxu0 0.0
    %1499 = vmatprep.subr.mxu0 0.0
    %1500 = vmatpush1.msra.mxu0 0.0
    %1501 = vmatprep.subr.mxu0 0.0
    %1502 = vmatpush1.msra.mxu0 0.0
    %1503 = vmatprep.subr.mxu0 0.0
    %1504 = vmatpush1.msra.mxu0 0.0
    %1505 = vmatprep.subr.mxu0 0.0
    %1506 = vmatpush1.msra.mxu0 0.0
    %1507 = vmatprep.subr.mxu0 0.0
    %1508 = vmatpush1.msra.mxu0 0.0
    %1509 = vmatprep.subr.mxu0 0.0
    %1510 = vmatpush1.msra.mxu0 0.0
    %1511 = vmatprep.subr.mxu0 0.0
    %1512 = vmatpush1.msra.mxu0 0.0
    %1513 = vmatprep.subr.mxu0 0.0
    %1514 = vmatpush1.msra.mxu0 0.0
    %1515 = vmatprep.subr.mxu0 0.0
    %1516 = vmatpush1.msra.mxu0 0.0
    %1517 = vmatprep.subr.mxu0 0.0
    %1518 = vmatpush1.msra.mxu0 0.0
    %1519 = vmatprep.subr.mxu0 0.0
    %1520 = vmatpush1.msra.mxu0 0.0
    %1521 = vmatprep.subr.mxu0 0.0
    %1522 = vmatpush1.msra.mxu0 0.0
    %1523 = vmatprep.subr.mxu0 0.0
    %1524 = vmatpush1.msra.mxu0 0.0
    %1525 = vmatprep.subr.mxu0 0.0
    %1526 = vmatpush1.msra.mxu0 0.0
    %1527 = vmatprep.subr.mxu0 0.0
    %1528 = vmatpush1.msra.mxu0 0.0
    %1529 = vmatprep.subr.mxu0 0.0
    %1530 = vmatpush1.msra.mxu0 0.0
    %1531 = vmatprep.subr.mxu0 0.0
    %1532 = vmatpush1.msra.mxu0 0.0
    %1533 = vmatprep.subr.mxu0 0.0
    %1534 = vmatpush1.msra.mxu0 0.0
    %1535 = vmatprep.subr.mxu0 0.0
    %1536 = vmatpush1.msra.mxu0 0.0
    %1537 = vmatprep.subr.mxu0 0.0
    %1538 = vmatpush1.msra.mxu0 0.0
    %1539 = vmatprep.subr.mxu0 0.0
    %1540 = vmatpush1.msra.mxu0 0.0
    %1541 = vmatprep.subr.mxu0 0.0
    %1542 = vmatpush1.msra.mxu0 0.0
    %1543 = vmatprep.subr.mxu0 0.0
    %1544 = vmatpush1.msra.mxu0 0.0
    %1545 = vmatprep.mubr.f32.mxu0 0.0
    %1546 = vmatmul.mubr.f32.gmra.mrb[0].mxu0 %v1479
    %v1547 = vpop.f32.mrb[0].mxu0
    %v1548 = vadd.f32 0.0, %v1547
    %v1549 = vpop.f32.mrb[0].mxu0
    %1550 = vdwg.mxu0
    %v1552 = vsel %vm432, %v1110, 0
    %1554 = vmatprep.subr.mxu0 0.0
    %1555 = vmatpush1.msra.mxu0 %v427
    %1556 = vmatprep.subr.mxu0 0.0
    %1557 = vmatpush1.msra.mxu0 0.0
    %1558 = vmatprep.subr.mxu0 0.0
    %1559 = vmatpush1.msra.mxu0 0.0
    %1560 = vmatprep.subr.mxu0 0.0
    %1561 = vmatpush1.msra.mxu0 0.0
    %1562 = vmatprep.subr.mxu0 0.0
    %1563 = vmatpush1.msra.mxu0 0.0
    %1564 = vmatprep.subr.mxu0 0.0
    %1565 = vmatpush1.msra.mxu0 0.0
    %1566 = vmatprep.subr.mxu0 0.0
    %1567 = vmatpush1.msra.mxu0 0.0
    %1568 = vmatprep.subr.mxu0 0.0
    %1569 = vmatpush1.msra.mxu0 0.0
    %1570 = vmatprep.subr.mxu0 0.0
    %1571 = vmatpush1.msra.mxu0 0.0
    %1572 = vmatprep.subr.mxu0 0.0
    %1573 = vmatpush1.msra.mxu0 0.0
    %1574 = vmatprep.subr.mxu0 0.0
    %1575 = vmatpush1.msra.mxu0 0.0
    %1576 = vmatprep.subr.mxu0 0.0
    %1577 = vmatpush1.msra.mxu0 0.0
    %1578 = vmatprep.subr.mxu0 0.0
    %1579 = vmatpush1.msra.mxu0 0.0
    %1580 = vmatprep.subr.mxu0 0.0
    %1581 = vmatpush1.msra.mxu0 0.0
    %1582 = vmatprep.subr.mxu0 0.0
    %1583 = vmatpush1.msra.mxu0 0.0
    %1584 = vmatprep.subr.mxu0 0.0
    %1585 = vmatpush1.msra.mxu0 0.0
    %1586 = vmatprep.subr.mxu0 0.0
    %1587 = vmatpush1.msra.mxu0 0.0
    %1588 = vmatprep.subr.mxu0 0.0
    %1589 = vmatpush1.msra.mxu0 0.0
    %1590 = vmatprep.subr.mxu0 0.0
    %1591 = vmatpush1.msra.mxu0 0.0
    %1592 = vmatprep.subr.mxu0 0.0
    %1593 = vmatpush1.msra.mxu0 0.0
    %1594 = vmatprep.subr.mxu0 0.0
    %1595 = vmatpush1.msra.mxu0 0.0
    %1596 = vmatprep.subr.mxu0 0.0
    %1597 = vmatpush1.msra.mxu0 0.0
    %1598 = vmatprep.subr.mxu0 0.0
    %1599 = vmatpush1.msra.mxu0 0.0
    %1600 = vmatprep.subr.mxu0 0.0
    %1601 = vmatpush1.msra.mxu0 0.0
    %1602 = vmatprep.subr.mxu0 0.0
    %1603 = vmatpush1.msra.mxu0 0.0
    %1604 = vmatprep.subr.mxu0 0.0
    %1605 = vmatpush1.msra.mxu0 0.0
    %1606 = vmatprep.subr.mxu0 0.0
    %1607 = vmatpush1.msra.mxu0 0.0
    %1608 = vmatprep.subr.mxu0 0.0
    %1609 = vmatpush1.msra.mxu0 0.0
    %1610 = vmatprep.subr.mxu0 0.0
    %1611 = vmatpush1.msra.mxu0 0.0
    %1612 = vmatprep.subr.mxu0 0.0
    %1613 = vmatpush1.msra.mxu0 0.0
    %1614 = vmatprep.subr.mxu0 0.0
    %1615 = vmatpush1.msra.mxu0 0.0
    %1616 = vmatprep.subr.mxu0 0.0
    %1617 = vmatpush1.msra.mxu0 0.0
    %1618 = vmatprep.mubr.f32.mxu0 0.0
    %1619 = vmatmul.mubr.f32.gmra.mrb[0].mxu0 %v1552
    %v1620 = vpop.f32.mrb[0].mxu0
    %v1621 = vadd.f32 0.0, %v1620
    %v1622 = vpop.f32.mrb[0].mxu0
    %1623 = vdwg.mxu0
    %v1625 = vsel %vm432, %v1112, 0
    %1627 = vmatprep.subr.mxu0 0.0
    %1628 = vmatpush1.msra.mxu0 %v429
    %1629 = vmatprep.subr.mxu0 0.0
    %1630 = vmatpush1.msra.mxu0 0.0
    %1631 = vmatprep.subr.mxu0 0.0
    %1632 = vmatpush1.msra.mxu0 0.0
    %1633 = vmatprep.subr.mxu0 0.0
    %1634 = vmatpush1.msra.mxu0 0.0
    %1635 = vmatprep.subr.mxu0 0.0
    %1636 = vmatpush1.msra.mxu0 0.0
    %1637 = vmatprep.subr.mxu0 0.0
    %1638 = vmatpush1.msra.mxu0 0.0
    %1639 = vmatprep.subr.mxu0 0.0
    %1640 = vmatpush1.msra.mxu0 0.0
    %1641 = vmatprep.subr.mxu0 0.0
    %1642 = vmatpush1.msra.mxu0 0.0
    %1643 = vmatprep.subr.mxu0 0.0
    %1644 = vmatpush1.msra.mxu0 0.0
    %1645 = vmatprep.subr.mxu0 0.0
    %1646 = vmatpush1.msra.mxu0 0.0
    %1647 = vmatprep.subr.mxu0 0.0
    %1648 = vmatpush1.msra.mxu0 0.0
    %1649 = vmatprep.subr.mxu0 0.0
    %1650 = vmatpush1.msra.mxu0 0.0
    %1651 = vmatprep.subr.mxu0 0.0
    %1652 = vmatpush1.msra.mxu0 0.0
    %1653 = vmatprep.subr.mxu0 0.0
    %1654 = vmatpush1.msra.mxu0 0.0
    %1655 = vmatprep.subr.mxu0 0.0
    %1656 = vmatpush1.msra.mxu0 0.0
    %1657 = vmatprep.subr.mxu0 0.0
    %1658 = vmatpush1.msra.mxu0 0.0
    %1659 = vmatprep.subr.mxu0 0.0
    %1660 = vmatpush1.msra.mxu0 0.0
    %1661 = vmatprep.subr.mxu0 0.0
    %1662 = vmatpush1.msra.mxu0 0.0
    %1663 = vmatprep.subr.mxu0 0.0
    %1664 = vmatpush1.msra.mxu0 0.0
    %1665 = vmatprep.subr.mxu0 0.0
    %1666 = vmatpush1.msra.mxu0 0.0
    %1667 = vmatprep.subr.mxu0 0.0
    %1668 = vmatpush1.msra.mxu0 0.0
    %1669 = vmatprep.subr.mxu0 0.0
    %1670 = vmatpush1.msra.mxu0 0.0
    %1671 = vmatprep.subr.mxu0 0.0
    %1672 = vmatpush1.msra.mxu0 0.0
    %1673 = vmatprep.subr.mxu0 0.0
    %1674 = vmatpush1.msra.mxu0 0.0
    %1675 = vmatprep.subr.mxu0 0.0
    %1676 = vmatpush1.msra.mxu0 0.0
    %1677 = vmatprep.subr.mxu0 0.0
    %1678 = vmatpush1.msra.mxu0 0.0
    %1679 = vmatprep.subr.mxu0 0.0
    %1680 = vmatpush1.msra.mxu0 0.0
    %1681 = vmatprep.subr.mxu0 0.0
    %1682 = vmatpush1.msra.mxu0 0.0
    %1683 = vmatprep.subr.mxu0 0.0
    %1684 = vmatpush1.msra.mxu0 0.0
    %1685 = vmatprep.subr.mxu0 0.0
    %1686 = vmatpush1.msra.mxu0 0.0
    %1687 = vmatprep.subr.mxu0 0.0
    %1688 = vmatpush1.msra.mxu0 0.0
    %1689 = vmatprep.subr.mxu0 0.0
    %1690 = vmatpush1.msra.mxu0 0.0
    %1691 = vmatprep.mubr.f32.mxu0 0.0
    %1692 = vmatmul.mubr.f32.gmra.mrb[0].mxu0 %v1625
    %v1693 = vpop.f32.mrb[0].mxu0
    %v1694 = vadd.f32 0.0, %v1693
    %v1695 = vpop.f32.mrb[0].mxu0
    %1696 = vdwg.mxu0
    %1699 = vrot.lane.b32.xlu0 %v1329, 8
    %v1700 = vpop.permute.xlu0 %1699
    %1701 = vrot.lane.b32.xlu0 %v1402, 8
    %v1702 = vpop.permute.xlu0 %1701
    %1707 = vrot.lane.b32.xlu0 %v1475, 16
    %v1708 = vpop.permute.xlu0 %1707
    %1709 = vrot.lane.b32.xlu0 %v1548, 16
    %v1710 = vpop.permute.xlu0 %1709
    %1715 = vrot.lane.b32.xlu0 %v1621, 24
    %v1716 = vpop.permute.xlu0 %1715
    %1717 = vrot.lane.b32.xlu0 %v1694, 24
    %v1718 = vpop.permute.xlu0 %1717
    %v1721 = vsel %vm432, %v1183, %v1700
    %v1722 = vsel %vm432, %v1256, %v1702
    %vm1723 = vcmask 130048
    %v1724 = vsel %vm1723, %v1721, %v1708
    %v1725 = vsel %vm1723, %v1722, %v1710
    %vm1726 = vcmask 195584
    %v1727 = vsel %vm1726, %v1724, %v1716
    %v1728 = vsel %vm1726, %v1725, %v1718
    %1729 = vst.msk [vmem:[#allocation13] sm:$0xff] %vm120, %v1727
    %1730 = vst.msk [vmem:[#allocation13 + $0x8] sm:$0xff] %vm120, %v1728
    // Predicated region
    $region54: #{tpu_custom_call.1} parent=1 // pred_check
      _
    $region55: #{tpu_custom_call.1} parent=1 // pred_check_branch
      %1732 = sbr.rel (0) target = $region57
    $region56: #{tpu_custom_call.1} parent=1 // pred_region
      %s1734 = ssub.s32 256, 256
      %1735 = vsyncadd [#allocation4], %s1734
      %s1736 = sshll.u32 [#allocation13], 4
      %s1737 = int_to_ptr.vmem [resolvable:$true] %s1736
      %1742 = dma.vmem_to_hbm [thread:$0]  %s1737, 256, %s7, [#allocation4], 128, 128, 8
    $region57: #{tpu_custom_call.1} parent=1 // pred_fallthru
      _
    // Predicated region
    $region58: #{tpu_custom_call.1} parent=1 // pred_check
      _
    $region59: #{tpu_custom_call.1} parent=1 // pred_check_branch
      %1744 = sbr.rel (0) target = $region61
    $region60: #{tpu_custom_call.1} parent=1 // pred_region
      %1745 = dma.done [#allocation4], 256
    $region61: #{tpu_custom_call.1} parent=1 // pred_fallthru
      _
    %1746 = vsyncpa [#allocation3], 1
    %1747 = vsyncpa [#allocation6], 1
    %1748 = vsyncpa [#allocation9], 1
    %1749 = vsyncpa [#allocation12], 1
    %1750 = vsyncpa [#allocation4], 1

</llo_original>
